<compile_context>
chip_gen: v6e
topology: v6e:2x2x1
jax: 0.10.0
libtpu: 0.0.40
codegen_flags: <defaults>
</compile_context>

<pallas_src>
import numpy as np
import jax
import jax.numpy as jnp
from jax.experimental import pallas as pl
from jax.experimental.pallas import tpu as pltpu

# ----------------------------------------------------------------------------
# Static configuration (Arguments / design from the original module, hard-coded)
# ----------------------------------------------------------------------------
N_QUBITS = 4
LAYER_REPE = 2
DIM = 2 ** N_QUBITS
CHUNK = 128                     # lanes per inner chunk (state = [16, 128] f32)

DESIGN = {
    'layer_repe': LAYER_REPE,
    'rot0': 'Rx', 'rot1': 'Ry', 'rot2': 'Rx', 'rot3': 'Ry',
    'enta0': ('IsingXX', (0, 1)),
    'enta1': ('IsingZZ', (1, 2)),
    'enta2': ('IsingXX', (2, 3)),
}

# Pauli-Z sign table: _ZT[k, i] = (-1)^{bit_i(k)}  (wire 0 = MSB of state index)
_ZT = np.array([[1 - 2 * ((k >> (N_QUBITS - 1 - i)) & 1) for i in range(N_QUBITS)]
                for k in range(DIM)], dtype=np.float32)             # (DIM, N_QUBITS)
_XX4 = np.kron([[0, 1], [1, 0]], [[0, 1], [1, 0]]).astype(np.complex64)
_HI = jax.lax.Precision.HIGHEST


# ----------------------------------------------------------------------------
# Pallas kernel
#   f_ref   : [cpb, 3*N_QUBITS, CHUNK]   transposed feature chunks (batch on lanes)
#   wre/wim : [LAYER_REPE*DIM, DIM]      per-layer weight-gate unitary (re / im)
#   zt_ref  : [N_QUBITS, DIM]            Pauli-Z sign table
#   o_ref   : [cpb, N_QUBITS, CHUNK]     <Z_i> per chunk
# ----------------------------------------------------------------------------
def quantum_kernel(f_ref, wre_ref, wim_ref, zt_ref, o_ref):
    cpb = f_ref.shape[0]

    # ---- layer-invariant bit masks / signs (hoisted out of every loop) ------
    row = jax.lax.broadcasted_iota(jnp.int32, (DIM, 1), 0)
    bits = [(row >> (N_QUBITS - 1 - i)) & 1 for i in range(N_QUBITS)]
    bit0 = [b == 0 for b in bits]                               # bool [DIM, 1]
    zsgn = [(1 - 2 * b).astype(jnp.float32) for b in bits]      # f32  [DIM, 1]

    def xor_flip(x, wire):
        # y[k] = x[k ^ m], m = bit mask of `wire`: XLU sublane rolls + 1 select.
        m = 1 << (N_QUBITS - 1 - wire)
        if 2 * m == DIM:                          # MSB flip == pure rotate
            return pltpu.roll(x, shift=m, axis=0)
        lo = pltpu.roll(x, shift=DIM - m, axis=0)   # lo[k] = x[k + m]
        hi = pltpu.roll(x, shift=m, axis=0)         # hi[k] = x[k - m]
        return jnp.where(bit0[wire], lo, hi)

    @pl.loop(0, cpb)
    def _chunk(c):
        f = f_ref[c]                                            # [12, CHUNK]
        cf = jnp.cos(0.5 * f)
        sf = jnp.sin(0.5 * f)

        # Fused Rot(phi,theta,omega) = RZ(omega) RY(theta) RZ(phi) matrix entries
        # per wire; u11 = conj(u00), u10 = -conj(u01) so only u00/u01 are kept.
        # Feature angles are reused by every layer -> computed once per chunk.
        u00r, u00i, u01r, u01i = [], [], [], []
        for i in range(N_QUBITS):
            cp, sp = cf[3 * i:3 * i + 1, :], sf[3 * i:3 * i + 1, :]
            ct, st = cf[3 * i + 1:3 * i + 2, :], sf[3 * i + 1:3 * i + 2, :]
            co, so = cf[3 * i + 2:3 * i + 3, :], sf[3 * i + 2:3 * i + 3, :]
            cpo = cp * co - sp * so          # cos((phi+omega)/2)
            spo = sp * co + cp * so          # sin((phi+omega)/2)
            cmo = cp * co + sp * so          # cos((phi-omega)/2)
            smo = sp * co - cp * so          # sin((phi-omega)/2)
            u00r.append(cpo * ct)
            u00i.append(-(spo * ct))
            u01r.append(-(cmo * st))
            u01i.append(-(smo * st))

        # ---- layer 0 Rot block acts on |0..0>: build the product state -------
        # qubit factor for bit b: b==0 -> u00, b==1 -> u10 = (-u01r, u01i)
        re = jnp.where(bit0[0], u00r[0], -u01r[0])
        im = jnp.where(bit0[0], u00i[0], u01i[0])
        for i in range(1, N_QUBITS):
            br = jnp.where(bit0[i], u00r[i], -u01r[i])
            bi = jnp.where(bit0[i], u00i[i], u01i[i])
            re, im = re * br - im * bi, re * bi + im * br

        for layer in range(LAYER_REPE):
            if layer > 0:
                # feature Rot block: one fused general 1-qubit gate per wire
                for i in range(N_QUBITS):
                    re_sw = xor_flip(re, i)
                    im_sw = xor_flip(im, i)
                    a_im = zsgn[i] * u00i[i]          # diag imag (sign per bit)
                    b_re = zsgn[i] * u01r[i]          # off-diag real (sign per bit)
                    nre = u00r[i] * re - a_im * im + b_re * re_sw - u01i[i] * im_sw
                    nim = u00r[i] * im + a_im * re + b_re * im_sw + u01i[i] * re_sw
                    re, im = nre, nim

            # batch-independent weight-gate block (RX/RY + IsingXX/IsingZZ) as a
            # single precomputed 16x16 complex unitary -> small MXU matmuls.
            wr = wre_ref[layer * DIM:(layer + 1) * DIM, :]      # [16, 16]
            wi = wim_ref[layer * DIM:(layer + 1) * DIM, :]
            nre = (jnp.dot(wr, re, preferred_element_type=jnp.float32)
                   - jnp.dot(wi, im, preferred_element_type=jnp.float32))
            nim = (jnp.dot(wr, im, preferred_element_type=jnp.float32)
                   + jnp.dot(wi, re, preferred_element_type=jnp.float32))
            re, im = nre, nim

        # <Z_i> = Ztable @ |amp|^2   (MXU [4,16] @ [16,CHUNK], lane-dense store)
        probs = re * re + im * im
        o_ref[c] = jnp.dot(zt_ref[...], probs, preferred_element_type=jnp.float32)


# ----------------------------------------------------------------------------
# Host-side construction of the per-layer weight-gate unitary (batch-independent)
# ----------------------------------------------------------------------------
def _mat2(a, b, c, d):
    e = [jnp.asarray(x, jnp.complex64) for x in (a, b, c, d)]
    return jnp.stack([jnp.stack(e[:2]), jnp.stack(e[2:])])


def _rx_mat(t):
    c, s = jnp.cos(t / 2), jnp.sin(t / 2)
    return _mat2(c, -1j * s, -1j * s, c)


def _ry_mat(t):
    c, s = jnp.cos(t / 2), jnp.sin(t / 2)
    return _mat2(c, -s, s, c)


def _ixx_mat(t):
    return (jnp.cos(t / 2) * jnp.eye(4, dtype=jnp.complex64)
            - 1j * jnp.sin(t / 2) * jnp.asarray(_XX4))


def _izz_mat(t):
    em, ep = jnp.exp(-1j * t / 2), jnp.exp(1j * t / 2)
    return jnp.diag(jnp.stack([em, ep, ep, em]))


def _lift1(g, wire):
    T = jnp.eye(DIM, dtype=jnp.complex64).reshape((2,) * N_QUBITS + (DIM,))
    T = jnp.tensordot(g, T, axes=[[1], [wire]], precision=_HI)
    T = jnp.moveaxis(T, 0, wire)
    return T.reshape(DIM, DIM)


def _lift2(g4, wires):
    a, b = wires
    T = jnp.eye(DIM, dtype=jnp.complex64).reshape((2,) * N_QUBITS + (DIM,))
    T = jnp.tensordot(g4.reshape(2, 2, 2, 2), T, axes=[[2, 3], [a, b]], precision=_HI)
    T = jnp.moveaxis(T, [0, 1], [a, b])
    return T.reshape(DIM, DIM)


def _weight_unitaries(w_rot, w_enta):
    """[LAYER_REPE, DIM, DIM] complex64: product of each layer's weight gates."""
    Ws = []
    for layer in range(LAYER_REPE):
        W = jnp.eye(DIM, dtype=jnp.complex64)
        for j in range(N_QUBITS - 1):
            g = _rx_mat(w_rot[layer, j]) if DESIGN['rot' + str(j)] == 'Rx' \
                else _ry_mat(w_rot[layer, j])
            W = jnp.matmul(_lift1(g, j), W, precision=_HI)
            kind, wires = DESIGN['enta' + str(j)]
            e = _ixx_mat(w_enta[layer, j]) if kind == 'IsingXX' \
                else _izz_mat(w_enta[layer, j])
            W = jnp.matmul(_lift2(e, wires), W, precision=_HI)
        jl = N_QUBITS - 1
        g = _rx_mat(w_rot[layer, jl]) if DESIGN['rot' + str(jl)] == 'Rx' \
            else _ry_mat(w_rot[layer, jl])
        W = jnp.matmul(_lift1(g, jl), W, precision=_HI)
        Ws.append(W)
    return jnp.stack(Ws)


# ----------------------------------------------------------------------------
# Wrapper (QuantumLayer.forward)
# ----------------------------------------------------------------------------
def quantum_layer(input_features, q_params_rot_flat, q_params_enta_flat,
                  *, chunks_per_block=16):
    """[B, 3*n_qubits] features -> [B, n_qubits] Pauli-Z expectations."""
    feats = jnp.asarray(input_features, jnp.float32)
    B = feats.shape[0]

    # pad batch only to the next multiple of 128 lanes
    n_chunks = max(1, -(-B // CHUNK))
    cpb = min(chunks_per_block, n_chunks)
    if n_chunks >= 2:                       # keep >=2 grid blocks (v7x has 2 TCs)
        cpb = min(cpb, max(1, n_chunks // 2))
    n_chunks_pad = -(-n_chunks // cpb) * cpb
    Bp = n_chunks_pad * CHUNK

    feats_p = jnp.pad(feats, ((0, Bp - B), (0, 0)))
    # [Bp, 12] -> [nc, CHUNK, 12] -> [nc, 12, CHUNK]   (batch on lanes)
    f_in = feats_p.reshape(n_chunks_pad, CHUNK, 3 * N_QUBITS).transpose(0, 2, 1)

    w_rot = jnp.asarray(q_params_rot_flat, jnp.float32).reshape(LAYER_REPE, N_QUBITS)
    w_enta = jnp.asarray(q_params_enta_flat, jnp.float32).reshape(LAYER_REPE, N_QUBITS - 1)
    W = _weight_unitaries(w_rot, w_enta)                         # [L, 16, 16] c64
    w_re = jnp.real(W).reshape(LAYER_REPE * DIM, DIM).astype(jnp.float32)
    w_im = jnp.imag(W).reshape(LAYER_REPE * DIM, DIM).astype(jnp.float32)
    zt = jnp.asarray(_ZT.T)                                      # [N_QUBITS, DIM]

    out = pl.pallas_call(
        quantum_kernel,
        out_shape=jax.ShapeDtypeStruct((n_chunks_pad, N_QUBITS, CHUNK), jnp.float32),
        grid_spec=pltpu.PrefetchScalarGridSpec(
            num_scalar_prefetch=0,
            grid=(n_chunks_pad // cpb,),
            in_specs=[
                pl.BlockSpec((cpb, 3 * N_QUBITS, CHUNK), lambda b: (b, 0, 0)),
                pl.BlockSpec((LAYER_REPE * DIM, DIM), lambda b: (0, 0)),
                pl.BlockSpec((LAYER_REPE * DIM, DIM), lambda b: (0, 0)),
                pl.BlockSpec((N_QUBITS, DIM), lambda b: (0, 0)),
            ],
            out_specs=pl.BlockSpec((cpb, N_QUBITS, CHUNK), lambda b: (b, 0, 0)),
        ),
        compiler_params=pltpu.CompilerParams(dimension_semantics=("parallel",)),
    )(f_in, w_re, w_im, zt)

    # [nc, 4, CHUNK] -> [nc, CHUNK, 4] -> [Bp, 4] -> [B, 4]
    return out.transpose(0, 2, 1).reshape(Bp, N_QUBITS)[:B]


# ----------------------------------------------------------------------------
# Pure-JAX reference (independent complex64 tensordot simulation) for checking
# ----------------------------------------------------------------------------
def _ref_single(feat, w_rot, w_enta):
    n = N_QUBITS
    st = jnp.zeros((2,) * n, jnp.complex64).at[(0,) * n].set(1.0)

    def ap1(st, U, w):
        st = jnp.tensordot(U, st, axes=[[1], [w]])
        return jnp.moveaxis(st, 0, w)

    def ap2(st, U4, wires):
        a, b = wires
        U = U4.reshape(2, 2, 2, 2)
        st = jnp.tensordot(U, st, axes=[[2, 3], [a, b]])
        return jnp.moveaxis(st, [0, 1], [a, b])

    def RZ(t):
        return jnp.diag(jnp.stack([jnp.exp(-1j * t / 2), jnp.exp(1j * t / 2)]))

    for layer in range(LAYER_REPE):
        for i in range(n):
            phi, theta, omega = feat[3 * i], feat[3 * i + 1], feat[3 * i + 2]
            st = ap1(st, RZ(phi), i)
            st = ap1(st, _ry_mat(theta), i)
            st = ap1(st, RZ(omega), i)
        for j in range(n - 1):
            g = _rx_mat(w_rot[layer, j]) if DESIGN['rot' + str(j)] == 'Rx' \
                else _ry_mat(w_rot[layer, j])
            st = ap1(st, g, j)
            kind, wires = DESIGN['enta' + str(j)]
            ent = _ixx_mat(w_enta[layer, j]) if kind == 'IsingXX' \
                else _izz_mat(w_enta[layer, j])
            st = ap2(st, ent, wires)
        jl = n - 1
        g = _rx_mat(w_rot[layer, jl]) if DESIGN['rot' + str(jl)] == 'Rx' \
            else _ry_mat(w_rot[layer, jl])
        st = ap1(st, g, jl)

    probs = jnp.abs(st.reshape(DIM)) ** 2
    return jnp.dot(probs.astype(jnp.float32), jnp.asarray(_ZT))


# ----------------------------------------------------------------------------
if __name__ == "__main__":
    key = jax.random.PRNGKey(0)
    k1, k2, k3 = jax.random.split(key, 3)
    B = 512                                   # 4 chunks -> 2 grid blocks of 2 chunks
    feats = jax.random.uniform(k1, (B, 3 * N_QUBITS), jnp.float32,
                               minval=-np.pi, maxval=np.pi)
    q_params_rot = np.pi * jax.random.uniform(k2, (LAYER_REPE * N_QUBITS,), jnp.float32)
    q_params_enta = np.pi * jax.random.uniform(k3, (LAYER_REPE * (N_QUBITS - 1),), jnp.float32)

    out = quantum_layer(feats, q_params_rot, q_params_enta)
    out = jax.block_until_ready(out)

    ref = jax.vmap(_ref_single, in_axes=(0, None, None))(
        feats,
        q_params_rot.reshape(LAYER_REPE, N_QUBITS),
        q_params_enta.reshape(LAYER_REPE, N_QUBITS - 1))

    assert out.shape == (B, N_QUBITS)
    assert bool(jnp.all(jnp.isfinite(out)))
    max_err = float(jnp.max(jnp.abs(out - ref)))
    assert max_err < 1e-4, f"mismatch vs reference: {max_err}"

    # tiny / ragged batch path (pads to one 128-lane chunk, grid of 1)
    out_small = jax.block_until_ready(quantum_layer(feats[:3], q_params_rot, q_params_enta))
    err_small = float(jnp.max(jnp.abs(out_small - ref[:3])))
    assert err_small < 1e-4, f"small-batch mismatch vs reference: {err_small}"

    print("KERNEL_OK")
</pallas_src>

<mosaic_0001>
module attributes {stable_mosaic.version = 11 : i64} {
  func.func @quantum_kernel(%arg0: i32, %arg1: memref<2x12x128xf32, #tpu.memory_space<vmem>>, %arg2: memref<32x16xf32, #tpu.memory_space<vmem>>, %arg3: memref<32x16xf32, #tpu.memory_space<vmem>>, %arg4: memref<4x16xf32, #tpu.memory_space<vmem>>, %arg5: memref<2x4x128xf32, #tpu.memory_space<vmem>>) attributes {dimension_semantics = [#tpu.dimension_semantics<parallel>], iteration_bounds = array<i64: 2>, scalar_prefetch = 0 : i64, scratch_operands = 0 : i64, tpu.core_type = #tpu.core_type<tc>, window_params = [{transform_indices = @transform_0, window_bounds = array<i64: 2, 12, 128>}, {pipeline_mode = #tpu.pipeline_mode<synchronous>, transform_indices = @transform_1, window_bounds = array<i64: 32, 16>}, {pipeline_mode = #tpu.pipeline_mode<synchronous>, transform_indices = @transform_2, window_bounds = array<i64: 32, 16>}, {pipeline_mode = #tpu.pipeline_mode<synchronous>, transform_indices = @transform_3, window_bounds = array<i64: 4, 16>}, {transform_indices = @transform_4, window_bounds = array<i64: 2, 4, 128>}]} {
    %0 = tpu.iota {dimensions = array<i32: 0>} : vector<16x1xi32>
    %c3_i32 = arith.constant 3 : i32
    %1 = vector.broadcast %c3_i32 : i32 to vector<16x1xi32>
    %2 = arith.shrsi %0, %1 : vector<16x1xi32>
    %c1_i32 = arith.constant 1 : i32
    %3 = vector.broadcast %c1_i32 : i32 to vector<16x1xi32>
    %4 = arith.andi %2, %3 : vector<16x1xi32>
    %c2_i32 = arith.constant 2 : i32
    %5 = vector.broadcast %c2_i32 : i32 to vector<16x1xi32>
    %6 = arith.shrsi %0, %5 : vector<16x1xi32>
    %c1_i32_0 = arith.constant 1 : i32
    %7 = vector.broadcast %c1_i32_0 : i32 to vector<16x1xi32>
    %8 = arith.andi %6, %7 : vector<16x1xi32>
    %c1_i32_1 = arith.constant 1 : i32
    %9 = vector.broadcast %c1_i32_1 : i32 to vector<16x1xi32>
    %10 = arith.shrsi %0, %9 : vector<16x1xi32>
    %c1_i32_2 = arith.constant 1 : i32
    %11 = vector.broadcast %c1_i32_2 : i32 to vector<16x1xi32>
    %12 = arith.andi %10, %11 : vector<16x1xi32>
    %c0_i32 = arith.constant 0 : i32
    %13 = vector.broadcast %c0_i32 : i32 to vector<16x1xi32>
    %14 = arith.shrsi %0, %13 : vector<16x1xi32>
    %c1_i32_3 = arith.constant 1 : i32
    %15 = vector.broadcast %c1_i32_3 : i32 to vector<16x1xi32>
    %16 = arith.andi %14, %15 : vector<16x1xi32>
    %c0_i32_4 = arith.constant 0 : i32
    %17 = vector.broadcast %c0_i32_4 : i32 to vector<16x1xi32>
    %18 = arith.cmpi eq, %4, %17 : vector<16x1xi32>
    %c0_i32_5 = arith.constant 0 : i32
    %19 = vector.broadcast %c0_i32_5 : i32 to vector<16x1xi32>
    %20 = arith.cmpi eq, %8, %19 : vector<16x1xi32>
    %c0_i32_6 = arith.constant 0 : i32
    %21 = vector.broadcast %c0_i32_6 : i32 to vector<16x1xi32>
    %22 = arith.cmpi eq, %12, %21 : vector<16x1xi32>
    %c0_i32_7 = arith.constant 0 : i32
    %23 = vector.broadcast %c0_i32_7 : i32 to vector<16x1xi32>
    %24 = arith.cmpi eq, %16, %23 : vector<16x1xi32>
    %c2_i32_8 = arith.constant 2 : i32
    %25 = vector.broadcast %c2_i32_8 : i32 to vector<16x1xi32>
    %26 = arith.muli %25, %4 : vector<16x1xi32>
    %c1_i32_9 = arith.constant 1 : i32
    %27 = vector.broadcast %c1_i32_9 : i32 to vector<16x1xi32>
    %28 = arith.subi %27, %26 : vector<16x1xi32>
    %29 = arith.sitofp %28 : vector<16x1xi32> to vector<16x1xf32>
    %c2_i32_10 = arith.constant 2 : i32
    %30 = vector.broadcast %c2_i32_10 : i32 to vector<16x1xi32>
    %31 = arith.muli %30, %8 : vector<16x1xi32>
    %c1_i32_11 = arith.constant 1 : i32
    %32 = vector.broadcast %c1_i32_11 : i32 to vector<16x1xi32>
    %33 = arith.subi %32, %31 : vector<16x1xi32>
    %34 = arith.sitofp %33 : vector<16x1xi32> to vector<16x1xf32>
    %c2_i32_12 = arith.constant 2 : i32
    %35 = vector.broadcast %c2_i32_12 : i32 to vector<16x1xi32>
    %36 = arith.muli %35, %12 : vector<16x1xi32>
    %c1_i32_13 = arith.constant 1 : i32
    %37 = vector.broadcast %c1_i32_13 : i32 to vector<16x1xi32>
    %38 = arith.subi %37, %36 : vector<16x1xi32>
    %39 = arith.sitofp %38 : vector<16x1xi32> to vector<16x1xf32>
    %c2_i32_14 = arith.constant 2 : i32
    %40 = vector.broadcast %c2_i32_14 : i32 to vector<16x1xi32>
    %41 = arith.muli %40, %16 : vector<16x1xi32>
    %c1_i32_15 = arith.constant 1 : i32
    %42 = vector.broadcast %c1_i32_15 : i32 to vector<16x1xi32>
    %43 = arith.subi %42, %41 : vector<16x1xi32>
    %44 = arith.sitofp %43 : vector<16x1xi32> to vector<16x1xf32>
    %c0_i32_16 = arith.constant 0 : i32
    %c2_i32_17 = arith.constant 2 : i32
    %45 = arith.addi %c0_i32_16, %c2_i32_17 : i32
    %c1_i32_18 = arith.constant 1 : i32
    scf.for %arg6 = %c0_i32_16 to %45 step %c1_i32_18  : i32 {
      %c1_i32_20 = arith.constant 1 : i32
      %46 = arith.muli %arg6, %c1_i32_20 : i32
      %c0_i32_21 = arith.constant 0 : i32
      %47 = arith.addi %c0_i32_21, %46 : i32
      %48 = arith.index_cast %47 : i32 to index
      %c0 = arith.constant 0 : index
      %c0_22 = arith.constant 0 : index
      %49 = vector.load %arg1[%48, %c0, %c0_22] : memref<2x12x128xf32, #tpu.memory_space<vmem>>, vector<1x12x128xf32>
      %50 = vector.shape_cast %49 : vector<1x12x128xf32> to vector<12x128xf32>
      %cst = arith.constant 5.000000e-01 : f32
      %51 = vector.broadcast %cst : f32 to vector<12x128xf32>
      %52 = arith.mulf %51, %50 : vector<12x128xf32>
      %53 = math.cos %52 : vector<12x128xf32>
      %cst_23 = arith.constant 5.000000e-01 : f32
      %54 = vector.broadcast %cst_23 : f32 to vector<12x128xf32>
      %55 = arith.mulf %54, %50 : vector<12x128xf32>
      %56 = math.sin %55 : vector<12x128xf32>
      %57 = vector.extract_strided_slice %53 {offsets = [0, 0], sizes = [1, 128], strides = [1, 1]} : vector<12x128xf32> to vector<1x128xf32>
      %58 = vector.extract_strided_slice %56 {offsets = [0, 0], sizes = [1, 128], strides = [1, 1]} : vector<12x128xf32> to vector<1x128xf32>
      %59 = vector.extract_strided_slice %53 {offsets = [1, 0], sizes = [1, 128], strides = [1, 1]} : vector<12x128xf32> to vector<1x128xf32>
      %60 = vector.extract_strided_slice %56 {offsets = [1, 0], sizes = [1, 128], strides = [1, 1]} : vector<12x128xf32> to vector<1x128xf32>
      %61 = vector.extract_strided_slice %53 {offsets = [2, 0], sizes = [1, 128], strides = [1, 1]} : vector<12x128xf32> to vector<1x128xf32>
      %62 = vector.extract_strided_slice %56 {offsets = [2, 0], sizes = [1, 128], strides = [1, 1]} : vector<12x128xf32> to vector<1x128xf32>
      %63 = arith.mulf %57, %61 : vector<1x128xf32>
      %64 = arith.mulf %58, %62 : vector<1x128xf32>
      %65 = arith.subf %63, %64 : vector<1x128xf32>
      %66 = arith.mulf %58, %61 : vector<1x128xf32>
      %67 = arith.mulf %57, %62 : vector<1x128xf32>
      %68 = arith.addf %66, %67 : vector<1x128xf32>
      %69 = arith.mulf %57, %61 : vector<1x128xf32>
      %70 = arith.mulf %58, %62 : vector<1x128xf32>
      %71 = arith.addf %69, %70 : vector<1x128xf32>
      %72 = arith.mulf %58, %61 : vector<1x128xf32>
      %73 = arith.mulf %57, %62 : vector<1x128xf32>
      %74 = arith.subf %72, %73 : vector<1x128xf32>
      %75 = arith.mulf %65, %59 : vector<1x128xf32>
      %76 = arith.mulf %68, %59 : vector<1x128xf32>
      %cst_24 = arith.constant 0.000000e+00 : f32
      %77 = vector.broadcast %cst_24 : f32 to vector<1x128xf32>
      %78 = arith.subf %77, %76 : vector<1x128xf32>
      %79 = arith.mulf %71, %60 : vector<1x128xf32>
      %cst_25 = arith.constant 0.000000e+00 : f32
      %80 = vector.broadcast %cst_25 : f32 to vector<1x128xf32>
      %81 = arith.subf %80, %79 : vector<1x128xf32>
      %82 = arith.mulf %74, %60 : vector<1x128xf32>
      %cst_26 = arith.constant 0.000000e+00 : f32
      %83 = vector.broadcast %cst_26 : f32 to vector<1x128xf32>
      %84 = arith.subf %83, %82 : vector<1x128xf32>
      %85 = vector.extract_strided_slice %53 {offsets = [3, 0], sizes = [1, 128], strides = [1, 1]} : vector<12x128xf32> to vector<1x128xf32>
      %86 = vector.extract_strided_slice %56 {offsets = [3, 0], sizes = [1, 128], strides = [1, 1]} : vector<12x128xf32> to vector<1x128xf32>
      %87 = vector.extract_strided_slice %53 {offsets = [4, 0], sizes = [1, 128], strides = [1, 1]} : vector<12x128xf32> to vector<1x128xf32>
      %88 = vector.extract_strided_slice %56 {offsets = [4, 0], sizes = [1, 128], strides = [1, 1]} : vector<12x128xf32> to vector<1x128xf32>
      %89 = vector.extract_strided_slice %53 {offsets = [5, 0], sizes = [1, 128], strides = [1, 1]} : vector<12x128xf32> to vector<1x128xf32>
      %90 = vector.extract_strided_slice %56 {offsets = [5, 0], sizes = [1, 128], strides = [1, 1]} : vector<12x128xf32> to vector<1x128xf32>
      %91 = arith.mulf %85, %89 : vector<1x128xf32>
      %92 = arith.mulf %86, %90 : vector<1x128xf32>
      %93 = arith.subf %91, %92 : vector<1x128xf32>
      %94 = arith.mulf %86, %89 : vector<1x128xf32>
      %95 = arith.mulf %85, %90 : vector<1x128xf32>
      %96 = arith.addf %94, %95 : vector<1x128xf32>
      %97 = arith.mulf %85, %89 : vector<1x128xf32>
      %98 = arith.mulf %86, %90 : vector<1x128xf32>
      %99 = arith.addf %97, %98 : vector<1x128xf32>
      %100 = arith.mulf %86, %89 : vector<1x128xf32>
      %101 = arith.mulf %85, %90 : vector<1x128xf32>
      %102 = arith.subf %100, %101 : vector<1x128xf32>
      %103 = arith.mulf %93, %87 : vector<1x128xf32>
      %104 = arith.mulf %96, %87 : vector<1x128xf32>
      %cst_27 = arith.constant 0.000000e+00 : f32
      %105 = vector.broadcast %cst_27 : f32 to vector<1x128xf32>
      %106 = arith.subf %105, %104 : vector<1x128xf32>
      %107 = arith.mulf %99, %88 : vector<1x128xf32>
      %cst_28 = arith.constant 0.000000e+00 : f32
      %108 = vector.broadcast %cst_28 : f32 to vector<1x128xf32>
      %109 = arith.subf %108, %107 : vector<1x128xf32>
      %110 = arith.mulf %102, %88 : vector<1x128xf32>
      %cst_29 = arith.constant 0.000000e+00 : f32
      %111 = vector.broadcast %cst_29 : f32 to vector<1x128xf32>
      %112 = arith.subf %111, %110 : vector<1x128xf32>
      %113 = vector.extract_strided_slice %53 {offsets = [6, 0], sizes = [1, 128], strides = [1, 1]} : vector<12x128xf32> to vector<1x128xf32>
      %114 = vector.extract_strided_slice %56 {offsets = [6, 0], sizes = [1, 128], strides = [1, 1]} : vector<12x128xf32> to vector<1x128xf32>
      %115 = vector.extract_strided_slice %53 {offsets = [7, 0], sizes = [1, 128], strides = [1, 1]} : vector<12x128xf32> to vector<1x128xf32>
      %116 = vector.extract_strided_slice %56 {offsets = [7, 0], sizes = [1, 128], strides = [1, 1]} : vector<12x128xf32> to vector<1x128xf32>
      %117 = vector.extract_strided_slice %53 {offsets = [8, 0], sizes = [1, 128], strides = [1, 1]} : vector<12x128xf32> to vector<1x128xf32>
      %118 = vector.extract_strided_slice %56 {offsets = [8, 0], sizes = [1, 128], strides = [1, 1]} : vector<12x128xf32> to vector<1x128xf32>
      %119 = arith.mulf %113, %117 : vector<1x128xf32>
      %120 = arith.mulf %114, %118 : vector<1x128xf32>
      %121 = arith.subf %119, %120 : vector<1x128xf32>
      %122 = arith.mulf %114, %117 : vector<1x128xf32>
      %123 = arith.mulf %113, %118 : vector<1x128xf32>
      %124 = arith.addf %122, %123 : vector<1x128xf32>
      %125 = arith.mulf %113, %117 : vector<1x128xf32>
      %126 = arith.mulf %114, %118 : vector<1x128xf32>
      %127 = arith.addf %125, %126 : vector<1x128xf32>
      %128 = arith.mulf %114, %117 : vector<1x128xf32>
      %129 = arith.mulf %113, %118 : vector<1x128xf32>
      %130 = arith.subf %128, %129 : vector<1x128xf32>
      %131 = arith.mulf %121, %115 : vector<1x128xf32>
      %132 = arith.mulf %124, %115 : vector<1x128xf32>
      %cst_30 = arith.constant 0.000000e+00 : f32
      %133 = vector.broadcast %cst_30 : f32 to vector<1x128xf32>
      %134 = arith.subf %133, %132 : vector<1x128xf32>
      %135 = arith.mulf %127, %116 : vector<1x128xf32>
      %cst_31 = arith.constant 0.000000e+00 : f32
      %136 = vector.broadcast %cst_31 : f32 to vector<1x128xf32>
      %137 = arith.subf %136, %135 : vector<1x128xf32>
      %138 = arith.mulf %130, %116 : vector<1x128xf32>
      %cst_32 = arith.constant 0.000000e+00 : f32
      %139 = vector.broadcast %cst_32 : f32 to vector<1x128xf32>
      %140 = arith.subf %139, %138 : vector<1x128xf32>
      %141 = vector.extract_strided_slice %53 {offsets = [9, 0], sizes = [1, 128], strides = [1, 1]} : vector<12x128xf32> to vector<1x128xf32>
      %142 = vector.extract_strided_slice %56 {offsets = [9, 0], sizes = [1, 128], strides = [1, 1]} : vector<12x128xf32> to vector<1x128xf32>
      %143 = vector.extract_strided_slice %53 {offsets = [10, 0], sizes = [1, 128], strides = [1, 1]} : vector<12x128xf32> to vector<1x128xf32>
      %144 = vector.extract_strided_slice %56 {offsets = [10, 0], sizes = [1, 128], strides = [1, 1]} : vector<12x128xf32> to vector<1x128xf32>
      %145 = vector.extract_strided_slice %53 {offsets = [11, 0], sizes = [1, 128], strides = [1, 1]} : vector<12x128xf32> to vector<1x128xf32>
      %146 = vector.extract_strided_slice %56 {offsets = [11, 0], sizes = [1, 128], strides = [1, 1]} : vector<12x128xf32> to vector<1x128xf32>
      %147 = arith.mulf %141, %145 : vector<1x128xf32>
      %148 = arith.mulf %142, %146 : vector<1x128xf32>
      %149 = arith.subf %147, %148 : vector<1x128xf32>
      %150 = arith.mulf %142, %145 : vector<1x128xf32>
      %151 = arith.mulf %141, %146 : vector<1x128xf32>
      %152 = arith.addf %150, %151 : vector<1x128xf32>
      %153 = arith.mulf %141, %145 : vector<1x128xf32>
      %154 = arith.mulf %142, %146 : vector<1x128xf32>
      %155 = arith.addf %153, %154 : vector<1x128xf32>
      %156 = arith.mulf %142, %145 : vector<1x128xf32>
      %157 = arith.mulf %141, %146 : vector<1x128xf32>
      %158 = arith.subf %156, %157 : vector<1x128xf32>
      %159 = arith.mulf %149, %143 : vector<1x128xf32>
      %160 = arith.mulf %152, %143 : vector<1x128xf32>
      %cst_33 = arith.constant 0.000000e+00 : f32
      %161 = vector.broadcast %cst_33 : f32 to vector<1x128xf32>
      %162 = arith.subf %161, %160 : vector<1x128xf32>
      %163 = arith.mulf %155, %144 : vector<1x128xf32>
      %cst_34 = arith.constant 0.000000e+00 : f32
      %164 = vector.broadcast %cst_34 : f32 to vector<1x128xf32>
      %165 = arith.subf %164, %163 : vector<1x128xf32>
      %166 = arith.mulf %158, %144 : vector<1x128xf32>
      %cst_35 = arith.constant 0.000000e+00 : f32
      %167 = vector.broadcast %cst_35 : f32 to vector<1x128xf32>
      %168 = arith.subf %167, %166 : vector<1x128xf32>
      %cst_36 = arith.constant 0.000000e+00 : f32
      %169 = vector.broadcast %cst_36 : f32 to vector<1x128xf32>
      %170 = arith.subf %169, %81 : vector<1x128xf32>
      %171 = vector.shape_cast %18 : vector<16x1xi1> to vector<16x1xi1>
      %172 = vector.broadcast %171 : vector<16x1xi1> to vector<16x128xi1>
      %173 = vector.shape_cast %75 : vector<1x128xf32> to vector<1x128xf32>
      %174 = vector.broadcast %173 : vector<1x128xf32> to vector<16x128xf32>
      %175 = vector.shape_cast %170 : vector<1x128xf32> to vector<1x128xf32>
      %176 = vector.broadcast %175 : vector<1x128xf32> to vector<16x128xf32>
      %177 = arith.select %172, %174, %176 : vector<16x128xi1>, vector<16x128xf32>
      %178 = vector.shape_cast %18 : vector<16x1xi1> to vector<16x1xi1>
      %179 = vector.broadcast %178 : vector<16x1xi1> to vector<16x128xi1>
      %180 = vector.shape_cast %78 : vector<1x128xf32> to vector<1x128xf32>
      %181 = vector.broadcast %180 : vector<1x128xf32> to vector<16x128xf32>
      %182 = vector.shape_cast %84 : vector<1x128xf32> to vector<1x128xf32>
      %183 = vector.broadcast %182 : vector<1x128xf32> to vector<16x128xf32>
      %184 = arith.select %179, %181, %183 : vector<16x128xi1>, vector<16x128xf32>
      %cst_37 = arith.constant 0.000000e+00 : f32
      %185 = vector.broadcast %cst_37 : f32 to vector<1x128xf32>
      %186 = arith.subf %185, %109 : vector<1x128xf32>
      %187 = vector.shape_cast %20 : vector<16x1xi1> to vector<16x1xi1>
      %188 = vector.broadcast %187 : vector<16x1xi1> to vector<16x128xi1>
      %189 = vector.shape_cast %103 : vector<1x128xf32> to vector<1x128xf32>
      %190 = vector.broadcast %189 : vector<1x128xf32> to vector<16x128xf32>
      %191 = vector.shape_cast %186 : vector<1x128xf32> to vector<1x128xf32>
      %192 = vector.broadcast %191 : vector<1x128xf32> to vector<16x128xf32>
      %193 = arith.select %188, %190, %192 : vector<16x128xi1>, vector<16x128xf32>
      %194 = vector.shape_cast %20 : vector<16x1xi1> to vector<16x1xi1>
      %195 = vector.broadcast %194 : vector<16x1xi1> to vector<16x128xi1>
      %196 = vector.shape_cast %106 : vector<1x128xf32> to vector<1x128xf32>
      %197 = vector.broadcast %196 : vector<1x128xf32> to vector<16x128xf32>
      %198 = vector.shape_cast %112 : vector<1x128xf32> to vector<1x128xf32>
      %199 = vector.broadcast %198 : vector<1x128xf32> to vector<16x128xf32>
      %200 = arith.select %195, %197, %199 : vector<16x128xi1>, vector<16x128xf32>
      %201 = arith.mulf %177, %193 : vector<16x128xf32>
      %202 = arith.mulf %184, %200 : vector<16x128xf32>
      %203 = arith.subf %201, %202 : vector<16x128xf32>
      %204 = arith.mulf %177, %200 : vector<16x128xf32>
      %205 = arith.mulf %184, %193 : vector<16x128xf32>
      %206 = arith.addf %204, %205 : vector<16x128xf32>
      %cst_38 = arith.constant 0.000000e+00 : f32
      %207 = vector.broadcast %cst_38 : f32 to vector<1x128xf32>
      %208 = arith.subf %207, %137 : vector<1x128xf32>
      %209 = vector.shape_cast %22 : vector<16x1xi1> to vector<16x1xi1>
      %210 = vector.broadcast %209 : vector<16x1xi1> to vector<16x128xi1>
      %211 = vector.shape_cast %131 : vector<1x128xf32> to vector<1x128xf32>
      %212 = vector.broadcast %211 : vector<1x128xf32> to vector<16x128xf32>
      %213 = vector.shape_cast %208 : vector<1x128xf32> to vector<1x128xf32>
      %214 = vector.broadcast %213 : vector<1x128xf32> to vector<16x128xf32>
      %215 = arith.select %210, %212, %214 : vector<16x128xi1>, vector<16x128xf32>
      %216 = vector.shape_cast %22 : vector<16x1xi1> to vector<16x1xi1>
      %217 = vector.broadcast %216 : vector<16x1xi1> to vector<16x128xi1>
      %218 = vector.shape_cast %134 : vector<1x128xf32> to vector<1x128xf32>
      %219 = vector.broadcast %218 : vector<1x128xf32> to vector<16x128xf32>
      %220 = vector.shape_cast %140 : vector<1x128xf32> to vector<1x128xf32>
      %221 = vector.broadcast %220 : vector<1x128xf32> to vector<16x128xf32>
      %222 = arith.select %217, %219, %221 : vector<16x128xi1>, vector<16x128xf32>
      %223 = arith.mulf %203, %215 : vector<16x128xf32>
      %224 = arith.mulf %206, %222 : vector<16x128xf32>
      %225 = arith.subf %223, %224 : vector<16x128xf32>
      %226 = arith.mulf %203, %222 : vector<16x128xf32>
      %227 = arith.mulf %206, %215 : vector<16x128xf32>
      %228 = arith.addf %226, %227 : vector<16x128xf32>
      %cst_39 = arith.constant 0.000000e+00 : f32
      %229 = vector.broadcast %cst_39 : f32 to vector<1x128xf32>
      %230 = arith.subf %229, %165 : vector<1x128xf32>
      %231 = vector.shape_cast %24 : vector<16x1xi1> to vector<16x1xi1>
      %232 = vector.broadcast %231 : vector<16x1xi1> to vector<16x128xi1>
      %233 = vector.shape_cast %159 : vector<1x128xf32> to vector<1x128xf32>
      %234 = vector.broadcast %233 : vector<1x128xf32> to vector<16x128xf32>
      %235 = vector.shape_cast %230 : vector<1x128xf32> to vector<1x128xf32>
      %236 = vector.broadcast %235 : vector<1x128xf32> to vector<16x128xf32>
      %237 = arith.select %232, %234, %236 : vector<16x128xi1>, vector<16x128xf32>
      %238 = vector.shape_cast %24 : vector<16x1xi1> to vector<16x1xi1>
      %239 = vector.broadcast %238 : vector<16x1xi1> to vector<16x128xi1>
      %240 = vector.shape_cast %162 : vector<1x128xf32> to vector<1x128xf32>
      %241 = vector.broadcast %240 : vector<1x128xf32> to vector<16x128xf32>
      %242 = vector.shape_cast %168 : vector<1x128xf32> to vector<1x128xf32>
      %243 = vector.broadcast %242 : vector<1x128xf32> to vector<16x128xf32>
      %244 = arith.select %239, %241, %243 : vector<16x128xi1>, vector<16x128xf32>
      %245 = arith.mulf %225, %237 : vector<16x128xf32>
      %246 = arith.mulf %228, %244 : vector<16x128xf32>
      %247 = arith.subf %245, %246 : vector<16x128xf32>
      %248 = arith.mulf %225, %244 : vector<16x128xf32>
      %249 = arith.mulf %228, %237 : vector<16x128xf32>
      %250 = arith.addf %248, %249 : vector<16x128xf32>
      %c0_40 = arith.constant 0 : index
      %c0_41 = arith.constant 0 : index
      %251 = vector.load %arg2[%c0_40, %c0_41] : memref<32x16xf32, #tpu.memory_space<vmem>>, vector<16x16xf32>
      %c0_42 = arith.constant 0 : index
      %c0_43 = arith.constant 0 : index
      %252 = vector.load %arg3[%c0_42, %c0_43] : memref<32x16xf32, #tpu.memory_space<vmem>>, vector<16x16xf32>
      %cst_44 = arith.constant dense<0.000000e+00> : vector<16x128xf32>
      %253 = tpu.matmul %251, %247, %cst_44 {dimension_numbers = #tpu.dot_dimension_numbers<[1], [0], [0], [1], [0, 0, 1, 1], [], []>} : vector<16x16xf32>, vector<16x128xf32>, vector<16x128xf32> -> vector<16x128xf32>
      %cst_45 = arith.constant dense<0.000000e+00> : vector<16x128xf32>
      %254 = tpu.matmul %252, %250, %cst_45 {dimension_numbers = #tpu.dot_dimension_numbers<[1], [0], [0], [1], [0, 0, 1, 1], [], []>} : vector<16x16xf32>, vector<16x128xf32>, vector<16x128xf32> -> vector<16x128xf32>
      %255 = arith.subf %253, %254 : vector<16x128xf32>
      %cst_46 = arith.constant dense<0.000000e+00> : vector<16x128xf32>
      %256 = tpu.matmul %251, %250, %cst_46 {dimension_numbers = #tpu.dot_dimension_numbers<[1], [0], [0], [1], [0, 0, 1, 1], [], []>} : vector<16x16xf32>, vector<16x128xf32>, vector<16x128xf32> -> vector<16x128xf32>
      %cst_47 = arith.constant dense<0.000000e+00> : vector<16x128xf32>
      %257 = tpu.matmul %252, %247, %cst_47 {dimension_numbers = #tpu.dot_dimension_numbers<[1], [0], [0], [1], [0, 0, 1, 1], [], []>} : vector<16x16xf32>, vector<16x128xf32>, vector<16x128xf32> -> vector<16x128xf32>
      %258 = arith.addf %256, %257 : vector<16x128xf32>
      %c8_i32 = arith.constant 8 : i32
      %259 = tpu.dynamic_rotate %255 by %c8_i32 dim 0 : vector<16x128xf32>, i32 -> vector<16x128xf32>
      %c8_i32_48 = arith.constant 8 : i32
      %260 = tpu.dynamic_rotate %258 by %c8_i32_48 dim 0 : vector<16x128xf32>, i32 -> vector<16x128xf32>
      %261 = vector.broadcast %29 : vector<16x1xf32> to vector<16x128xf32>
      %262 = vector.broadcast %78 : vector<1x128xf32> to vector<16x128xf32>
      %263 = arith.mulf %261, %262 : vector<16x128xf32>
      %264 = vector.broadcast %29 : vector<16x1xf32> to vector<16x128xf32>
      %265 = vector.broadcast %81 : vector<1x128xf32> to vector<16x128xf32>
      %266 = arith.mulf %264, %265 : vector<16x128xf32>
      %267 = vector.broadcast %75 : vector<1x128xf32> to vector<16x128xf32>
      %268 = arith.mulf %267, %255 : vector<16x128xf32>
      %269 = arith.mulf %263, %258 : vector<16x128xf32>
      %270 = arith.subf %268, %269 : vector<16x128xf32>
      %271 = arith.mulf %266, %259 : vector<16x128xf32>
      %272 = arith.addf %270, %271 : vector<16x128xf32>
      %273 = vector.broadcast %84 : vector<1x128xf32> to vector<16x128xf32>
      %274 = arith.mulf %273, %260 : vector<16x128xf32>
      %275 = arith.subf %272, %274 : vector<16x128xf32>
      %276 = vector.broadcast %75 : vector<1x128xf32> to vector<16x128xf32>
      %277 = arith.mulf %276, %258 : vector<16x128xf32>
      %278 = arith.mulf %263, %255 : vector<16x128xf32>
      %279 = arith.addf %277, %278 : vector<16x128xf32>
      %280 = arith.mulf %266, %260 : vector<16x128xf32>
      %281 = arith.addf %279, %280 : vector<16x128xf32>
      %282 = vector.broadcast %84 : vector<1x128xf32> to vector<16x128xf32>
      %283 = arith.mulf %282, %259 : vector<16x128xf32>
      %284 = arith.addf %281, %283 : vector<16x128xf32>
      %c12_i32 = arith.constant 12 : i32
      %285 = tpu.dynamic_rotate %275 by %c12_i32 dim 0 : vector<16x128xf32>, i32 -> vector<16x128xf32>
      %c4_i32 = arith.constant 4 : i32
      %286 = tpu.dynamic_rotate %275 by %c4_i32 dim 0 : vector<16x128xf32>, i32 -> vector<16x128xf32>
      %287 = vector.shape_cast %20 : vector<16x1xi1> to vector<16x1xi1>
      %288 = vector.broadcast %287 : vector<16x1xi1> to vector<16x128xi1>
      %289 = arith.select %288, %285, %286 : vector<16x128xi1>, vector<16x128xf32>
      %c12_i32_49 = arith.constant 12 : i32
      %290 = tpu.dynamic_rotate %284 by %c12_i32_49 dim 0 : vector<16x128xf32>, i32 -> vector<16x128xf32>
      %c4_i32_50 = arith.constant 4 : i32
      %291 = tpu.dynamic_rotate %284 by %c4_i32_50 dim 0 : vector<16x128xf32>, i32 -> vector<16x128xf32>
      %292 = vector.shape_cast %20 : vector<16x1xi1> to vector<16x1xi1>
      %293 = vector.broadcast %292 : vector<16x1xi1> to vector<16x128xi1>
      %294 = arith.select %293, %290, %291 : vector<16x128xi1>, vector<16x128xf32>
      %295 = vector.broadcast %34 : vector<16x1xf32> to vector<16x128xf32>
      %296 = vector.broadcast %106 : vector<1x128xf32> to vector<16x128xf32>
      %297 = arith.mulf %295, %296 : vector<16x128xf32>
      %298 = vector.broadcast %34 : vector<16x1xf32> to vector<16x128xf32>
      %299 = vector.broadcast %109 : vector<1x128xf32> to vector<16x128xf32>
      %300 = arith.mulf %298, %299 : vector<16x128xf32>
      %301 = vector.broadcast %103 : vector<1x128xf32> to vector<16x128xf32>
      %302 = arith.mulf %301, %275 : vector<16x128xf32>
      %303 = arith.mulf %297, %284 : vector<16x128xf32>
      %304 = arith.subf %302, %303 : vector<16x128xf32>
      %305 = arith.mulf %300, %289 : vector<16x128xf32>
      %306 = arith.addf %304, %305 : vector<16x128xf32>
      %307 = vector.broadcast %112 : vector<1x128xf32> to vector<16x128xf32>
      %308 = arith.mulf %307, %294 : vector<16x128xf32>
      %309 = arith.subf %306, %308 : vector<16x128xf32>
      %310 = vector.broadcast %103 : vector<1x128xf32> to vector<16x128xf32>
      %311 = arith.mulf %310, %284 : vector<16x128xf32>
      %312 = arith.mulf %297, %275 : vector<16x128xf32>
      %313 = arith.addf %311, %312 : vector<16x128xf32>
      %314 = arith.mulf %300, %294 : vector<16x128xf32>
      %315 = arith.addf %313, %314 : vector<16x128xf32>
      %316 = vector.broadcast %112 : vector<1x128xf32> to vector<16x128xf32>
      %317 = arith.mulf %316, %289 : vector<16x128xf32>
      %318 = arith.addf %315, %317 : vector<16x128xf32>
      %c14_i32 = arith.constant 14 : i32
      %319 = tpu.dynamic_rotate %309 by %c14_i32 dim 0 : vector<16x128xf32>, i32 -> vector<16x128xf32>
      %c2_i32_51 = arith.constant 2 : i32
      %320 = tpu.dynamic_rotate %309 by %c2_i32_51 dim 0 : vector<16x128xf32>, i32 -> vector<16x128xf32>
      %321 = vector.shape_cast %22 : vector<16x1xi1> to vector<16x1xi1>
      %322 = vector.broadcast %321 : vector<16x1xi1> to vector<16x128xi1>
      %323 = arith.select %322, %319, %320 : vector<16x128xi1>, vector<16x128xf32>
      %c14_i32_52 = arith.constant 14 : i32
      %324 = tpu.dynamic_rotate %318 by %c14_i32_52 dim 0 : vector<16x128xf32>, i32 -> vector<16x128xf32>
      %c2_i32_53 = arith.constant 2 : i32
      %325 = tpu.dynamic_rotate %318 by %c2_i32_53 dim 0 : vector<16x128xf32>, i32 -> vector<16x128xf32>
      %326 = vector.shape_cast %22 : vector<16x1xi1> to vector<16x1xi1>
      %327 = vector.broadcast %326 : vector<16x1xi1> to vector<16x128xi1>
      %328 = arith.select %327, %324, %325 : vector<16x128xi1>, vector<16x128xf32>
      %329 = vector.broadcast %39 : vector<16x1xf32> to vector<16x128xf32>
      %330 = vector.broadcast %134 : vector<1x128xf32> to vector<16x128xf32>
      %331 = arith.mulf %329, %330 : vector<16x128xf32>
      %332 = vector.broadcast %39 : vector<16x1xf32> to vector<16x128xf32>
      %333 = vector.broadcast %137 : vector<1x128xf32> to vector<16x128xf32>
      %334 = arith.mulf %332, %333 : vector<16x128xf32>
      %335 = vector.broadcast %131 : vector<1x128xf32> to vector<16x128xf32>
      %336 = arith.mulf %335, %309 : vector<16x128xf32>
      %337 = arith.mulf %331, %318 : vector<16x128xf32>
      %338 = arith.subf %336, %337 : vector<16x128xf32>
      %339 = arith.mulf %334, %323 : vector<16x128xf32>
      %340 = arith.addf %338, %339 : vector<16x128xf32>
      %341 = vector.broadcast %140 : vector<1x128xf32> to vector<16x128xf32>
      %342 = arith.mulf %341, %328 : vector<16x128xf32>
      %343 = arith.subf %340, %342 : vector<16x128xf32>
      %344 = vector.broadcast %131 : vector<1x128xf32> to vector<16x128xf32>
      %345 = arith.mulf %344, %318 : vector<16x128xf32>
      %346 = arith.mulf %331, %309 : vector<16x128xf32>
      %347 = arith.addf %345, %346 : vector<16x128xf32>
      %348 = arith.mulf %334, %328 : vector<16x128xf32>
      %349 = arith.addf %347, %348 : vector<16x128xf32>
      %350 = vector.broadcast %140 : vector<1x128xf32> to vector<16x128xf32>
      %351 = arith.mulf %350, %323 : vector<16x128xf32>
      %352 = arith.addf %349, %351 : vector<16x128xf32>
      %c15_i32 = arith.constant 15 : i32
      %353 = tpu.dynamic_rotate %343 by %c15_i32 dim 0 : vector<16x128xf32>, i32 -> vector<16x128xf32>
      %c1_i32_54 = arith.constant 1 : i32
      %354 = tpu.dynamic_rotate %343 by %c1_i32_54 dim 0 : vector<16x128xf32>, i32 -> vector<16x128xf32>
      %355 = vector.shape_cast %24 : vector<16x1xi1> to vector<16x1xi1>
      %356 = vector.broadcast %355 : vector<16x1xi1> to vector<16x128xi1>
      %357 = arith.select %356, %353, %354 : vector<16x128xi1>, vector<16x128xf32>
      %c15_i32_55 = arith.constant 15 : i32
      %358 = tpu.dynamic_rotate %352 by %c15_i32_55 dim 0 : vector<16x128xf32>, i32 -> vector<16x128xf32>
      %c1_i32_56 = arith.constant 1 : i32
      %359 = tpu.dynamic_rotate %352 by %c1_i32_56 dim 0 : vector<16x128xf32>, i32 -> vector<16x128xf32>
      %360 = vector.shape_cast %24 : vector<16x1xi1> to vector<16x1xi1>
      %361 = vector.broadcast %360 : vector<16x1xi1> to vector<16x128xi1>
      %362 = arith.select %361, %358, %359 : vector<16x128xi1>, vector<16x128xf32>
      %363 = vector.broadcast %44 : vector<16x1xf32> to vector<16x128xf32>
      %364 = vector.broadcast %162 : vector<1x128xf32> to vector<16x128xf32>
      %365 = arith.mulf %363, %364 : vector<16x128xf32>
      %366 = vector.broadcast %44 : vector<16x1xf32> to vector<16x128xf32>
      %367 = vector.broadcast %165 : vector<1x128xf32> to vector<16x128xf32>
      %368 = arith.mulf %366, %367 : vector<16x128xf32>
      %369 = vector.broadcast %159 : vector<1x128xf32> to vector<16x128xf32>
      %370 = arith.mulf %369, %343 : vector<16x128xf32>
      %371 = arith.mulf %365, %352 : vector<16x128xf32>
      %372 = arith.subf %370, %371 : vector<16x128xf32>
      %373 = arith.mulf %368, %357 : vector<16x128xf32>
      %374 = arith.addf %372, %373 : vector<16x128xf32>
      %375 = vector.broadcast %168 : vector<1x128xf32> to vector<16x128xf32>
      %376 = arith.mulf %375, %362 : vector<16x128xf32>
      %377 = arith.subf %374, %376 : vector<16x128xf32>
      %378 = vector.broadcast %159 : vector<1x128xf32> to vector<16x128xf32>
      %379 = arith.mulf %378, %352 : vector<16x128xf32>
      %380 = arith.mulf %365, %343 : vector<16x128xf32>
      %381 = arith.addf %379, %380 : vector<16x128xf32>
      %382 = arith.mulf %368, %362 : vector<16x128xf32>
      %383 = arith.addf %381, %382 : vector<16x128xf32>
      %384 = vector.broadcast %168 : vector<1x128xf32> to vector<16x128xf32>
      %385 = arith.mulf %384, %357 : vector<16x128xf32>
      %386 = arith.addf %383, %385 : vector<16x128xf32>
      %c16 = arith.constant 16 : index
      %c0_57 = arith.constant 0 : index
      %387 = vector.load %arg2[%c16, %c0_57] : memref<32x16xf32, #tpu.memory_space<vmem>>, vector<16x16xf32>
      %c16_58 = arith.constant 16 : index
      %c0_59 = arith.constant 0 : index
      %388 = vector.load %arg3[%c16_58, %c0_59] : memref<32x16xf32, #tpu.memory_space<vmem>>, vector<16x16xf32>
      %cst_60 = arith.constant dense<0.000000e+00> : vector<16x128xf32>
      %389 = tpu.matmul %387, %377, %cst_60 {dimension_numbers = #tpu.dot_dimension_numbers<[1], [0], [0], [1], [0, 0, 1, 1], [], []>} : vector<16x16xf32>, vector<16x128xf32>, vector<16x128xf32> -> vector<16x128xf32>
      %cst_61 = arith.constant dense<0.000000e+00> : vector<16x128xf32>
      %390 = tpu.matmul %388, %386, %cst_61 {dimension_numbers = #tpu.dot_dimension_numbers<[1], [0], [0], [1], [0, 0, 1, 1], [], []>} : vector<16x16xf32>, vector<16x128xf32>, vector<16x128xf32> -> vector<16x128xf32>
      %391 = arith.subf %389, %390 : vector<16x128xf32>
      %cst_62 = arith.constant dense<0.000000e+00> : vector<16x128xf32>
      %392 = tpu.matmul %387, %386, %cst_62 {dimension_numbers = #tpu.dot_dimension_numbers<[1], [0], [0], [1], [0, 0, 1, 1], [], []>} : vector<16x16xf32>, vector<16x128xf32>, vector<16x128xf32> -> vector<16x128xf32>
      %cst_63 = arith.constant dense<0.000000e+00> : vector<16x128xf32>
      %393 = tpu.matmul %388, %377, %cst_63 {dimension_numbers = #tpu.dot_dimension_numbers<[1], [0], [0], [1], [0, 0, 1, 1], [], []>} : vector<16x16xf32>, vector<16x128xf32>, vector<16x128xf32> -> vector<16x128xf32>
      %394 = arith.addf %392, %393 : vector<16x128xf32>
      %395 = arith.mulf %391, %391 : vector<16x128xf32>
      %396 = arith.mulf %394, %394 : vector<16x128xf32>
      %397 = arith.addf %395, %396 : vector<16x128xf32>
      %c0_64 = arith.constant 0 : index
      %c0_65 = arith.constant 0 : index
      %398 = vector.load %arg4[%c0_64, %c0_65] : memref<4x16xf32, #tpu.memory_space<vmem>>, vector<4x16xf32>
      %cst_66 = arith.constant dense<0.000000e+00> : vector<4x128xf32>
      %399 = tpu.matmul %398, %397, %cst_66 {dimension_numbers = #tpu.dot_dimension_numbers<[1], [0], [0], [1], [0, 0, 1, 1], [], []>} : vector<4x16xf32>, vector<16x128xf32>, vector<4x128xf32> -> vector<4x128xf32>
      %400 = arith.index_cast %47 : i32 to index
      %c0_67 = arith.constant 0 : index
      %c0_68 = arith.constant 0 : index
      %401 = vector.load %arg5[%400, %c0_67, %c0_68] : memref<2x4x128xf32, #tpu.memory_space<vmem>>, vector<1x4x128xf32>
      %402 = vector.shape_cast %401 : vector<1x4x128xf32> to vector<4x128xf32>
      %403 = vector.shape_cast %399 : vector<4x128xf32> to vector<1x4x128xf32>
      tpu.vector_store %arg5[%400, %c0_67, %c0_68], %403 {strides = array<i32>} : memref<2x4x128xf32, #tpu.memory_space<vmem>>, vector<1x4x128xf32>,
    }
    %c2_i32_19 = arith.constant 2 : i32
    return
  }
  func.func @transform_0(%arg0: i32) -> (i32, i32, i32) {
    %c0_i32 = arith.constant 0 : i32
    %c0_i32_0 = arith.constant 0 : i32
    %c0_i32_1 = arith.constant 0 : i32
    return %arg0, %c0_i32, %c0_i32_0 : i32, i32, i32
  }
  func.func @transform_1(%arg0: i32) -> (i32, i32) {
    %c0_i32 = arith.constant 0 : i32
    %c0_i32_0 = arith.constant 0 : i32
    %c0_i32_1 = arith.constant 0 : i32
    return %c0_i32, %c0_i32_0 : i32, i32
  }
  func.func @transform_2(%arg0: i32) -> (i32, i32) {
    %c0_i32 = arith.constant 0 : i32
    %c0_i32_0 = arith.constant 0 : i32
    %c0_i32_1 = arith.constant 0 : i32
    return %c0_i32, %c0_i32_0 : i32, i32
  }
  func.func @transform_3(%arg0: i32) -> (i32, i32) {
    %c0_i32 = arith.constant 0 : i32
    %c0_i32_0 = arith.constant 0 : i32
    %c0_i32_1 = arith.constant 0 : i32
    return %c0_i32, %c0_i32_0 : i32, i32
  }
  func.func @transform_4(%arg0: i32) -> (i32, i32, i32) {
    %c0_i32 = arith.constant 0 : i32
    %c0_i32_0 = arith.constant 0 : i32
    %c0_i32_1 = arith.constant 0 : i32
    return %arg0, %c0_i32, %c0_i32_0 : i32, i32, i32
  }
}

</mosaic_0001>

<llo_original>
// kernel: tpu_custom_call.1
$region0: #{tpu_custom_call.1}
  #allocation0 [shape = 'u32[]', space=smem, size = 0x4, offset = 0x4, fixed_abs, tag = 'smem constant byte address 0x4 - core index']
  #allocation1 [shape = 'u32[144,128]{1,0:T(1,128)}', space=vmem, size = 0x12000, scoped, tag = 'internal scratch']
  %s0 = inlined_call_operand.vmem [shape: f32[4,12,128], index: 0, kind: input, shape index: {}]
  %s1 = inlined_call_operand.vmem [shape: f32[32,16], index: 1, kind: input, shape index: {}]
  %s2 = inlined_call_operand.vmem [shape: f32[32,16], index: 2, kind: input, shape index: {}]
  %s3 = inlined_call_operand.vmem [shape: f32[4,16], index: 3, kind: input, shape index: {}]
  %s4 = inlined_call_operand.hbm [shape: f32[4,4,128], index: 4, kind: output, shape index: {}]
  %s5 = sld [smem:[#allocation0]]
  $region56: #{tpu_custom_call.1} parent=0
    _
  %s7 = ssub.s32 1, %s5
  %s8 = scalar_select 0, %s7, %s5
  $region1: #{tpu_custom_call.1} parent=0
    #allocation2 [shape = 'u8[8192]{0}', space=vmem, size = 0x2000, scoped, tag = 'output window, operand 0']
    #allocation3 [shape = 's32[2]{0}', space=sflag, size = 0x8, scoped, tag = 'scoped memory for tpu_custom_call.1']
    %9 = vsyncpa [#allocation3], 0
    %s10 = scalar_lea.sflag [#allocation3], 1
    %11 = vsyncpa %s10, 0
    loop: start=0, step=1, limit=4
    $region2: #{tpu_custom_call.1} parent=1 // loop_pre_header
      _
    $region3: #{tpu_custom_call.1} parent=1 // loop_header
      %s13 = sphi 0, %s17
      %p14 = scmp.ge.s32.totalorder %s13, 4
      %s23 = sphi 0, %s25
      %s26 = sphi 0, %s23
      %s27 = sphi 0, %s26
      %s43 = sphi 0, %s27
      %s47 = sphi 0, %s47
      %s49 = sphi 0, %s47
      %s50 = sphi 0, %s49
      %s64 = sphi 0, %s50
      %s68 = sphi 0, %s68
      %s70 = sphi 0, %s68
      %s71 = sphi 0, %s70
      %s85 = sphi 0, %s71
      %s89 = sphi 0, %s89
      %s91 = sphi 0, %s89
      %s92 = sphi 0, %s91
      %s106 = sphi 0, %s92
      %s112 = sphi 0, %s114
      %s115 = sphi 0, %s112
      %s116 = sphi 0, %s115
      %s132 = sphi 0, %s116
    $region4: #{tpu_custom_call.1} parent=1 // loop_header_branch
      %16 = sbr.rel (%p14) target = $region8
    $region5: #{tpu_custom_call.1} parent=1 // loop_body
      %s18 = ssub.s32 %s13, 1
      %s19 = ssub.s32 %s13, 2
      %s20 = sadd.s32 %s13, 1
      %s21 = ssub.s32 %s13, %s20
      %p22 = scmp.eq.s32.totalorder %s21, 0
      %s24 = sadd.s32 %s23, 1
      %s25 = scalar_select %p22, %s23, %s24
      %p28 = pneg %p22
      %p29 = scmp.eq.s32.totalorder %s13, 1
      %p30 = por %p28, %p29
      %p31 = scmp.ne.s32.totalorder %s23, %s26
      %p32 = scmp.eq.s32.totalorder %s13, 0
      %p33 = por %p31, %p32
      %p34 = scmp.ne.s32.totalorder %s23, %s26
      %p35 = scmp.eq.s32.totalorder %s18, 1
      %p36 = por %p34, %p35
      %p37 = scmp.ne.s32.totalorder %s26, %s27
      %p38 = scmp.eq.s32.totalorder %s18, 0
      %p39 = por %p37, %p38
      %p40 = scmp.ne.s32.totalorder %s26, %s27
      %p41 = scmp.eq.s32.totalorder %s19, 1
      %p42 = por %p40, %p41
      %p44 = scmp.ne.s32.totalorder %s27, %s43
      %p45 = scmp.eq.s32.totalorder %s19, 0
      %p46 = por %p44, %p45
      %s48 = sadd.s32 %s47, 1
      %p51 = scmp.eq.s32.totalorder %s13, 1
      %p52 = scmp.ne.s32.totalorder %s47, %s49
      %p53 = scmp.eq.s32.totalorder %s13, 0
      %p54 = por %p52, %p53
      %p55 = scmp.ne.s32.totalorder %s47, %s49
      %p56 = scmp.eq.s32.totalorder %s18, 1
      %p57 = por %p55, %p56
      %p58 = scmp.ne.s32.totalorder %s49, %s50
      %p59 = scmp.eq.s32.totalorder %s18, 0
      %p60 = por %p58, %p59
      %p61 = scmp.ne.s32.totalorder %s49, %s50
      %p62 = scmp.eq.s32.totalorder %s19, 1
      %p63 = por %p61, %p62
      %p65 = scmp.ne.s32.totalorder %s50, %s64
      %p66 = scmp.eq.s32.totalorder %s19, 0
      %p67 = por %p65, %p66
      %s69 = sadd.s32 %s68, 1
      %p72 = scmp.eq.s32.totalorder %s13, 1
      %p73 = scmp.ne.s32.totalorder %s68, %s70
      %p74 = scmp.eq.s32.totalorder %s13, 0
      %p75 = por %p73, %p74
      %p76 = scmp.ne.s32.totalorder %s68, %s70
      %p77 = scmp.eq.s32.totalorder %s18, 1
      %p78 = por %p76, %p77
      %p79 = scmp.ne.s32.totalorder %s70, %s71
      %p80 = scmp.eq.s32.totalorder %s18, 0
      %p81 = por %p79, %p80
      %p82 = scmp.ne.s32.totalorder %s70, %s71
      %p83 = scmp.eq.s32.totalorder %s19, 1
      %p84 = por %p82, %p83
      %p86 = scmp.ne.s32.totalorder %s71, %s85
      %p87 = scmp.eq.s32.totalorder %s19, 0
      %p88 = por %p86, %p87
      %s90 = sadd.s32 %s89, 1
      %p93 = scmp.eq.s32.totalorder %s13, 1
      %p94 = scmp.ne.s32.totalorder %s89, %s91
      %p95 = scmp.eq.s32.totalorder %s13, 0
      %p96 = por %p94, %p95
      %p97 = scmp.ne.s32.totalorder %s89, %s91
      %p98 = scmp.eq.s32.totalorder %s18, 1
      %p99 = por %p97, %p98
      %p100 = scmp.ne.s32.totalorder %s91, %s92
      %p101 = scmp.eq.s32.totalorder %s18, 0
      %p102 = por %p100, %p101
      %p103 = scmp.ne.s32.totalorder %s91, %s92
      %p104 = scmp.eq.s32.totalorder %s19, 1
      %p105 = por %p103, %p104
      %p107 = scmp.ne.s32.totalorder %s92, %s106
      %p108 = scmp.eq.s32.totalorder %s19, 0
      %p109 = por %p107, %p108
      %s110 = ssub.s32 %s13, %s20
      %p111 = scmp.eq.s32.totalorder %s110, 0
      %s113 = sadd.s32 %s112, 1
      %s114 = scalar_select %p111, %s112, %s113
      %p117 = pneg %p111
      %p118 = scmp.eq.s32.totalorder %s13, 1
      %p119 = por %p117, %p118
      %p120 = scmp.ne.s32.totalorder %s112, %s115
      %p121 = scmp.eq.s32.totalorder %s13, 0
      %p122 = por %p120, %p121
      %p123 = scmp.ne.s32.totalorder %s112, %s115
      %p124 = scmp.eq.s32.totalorder %s18, 1
      %p125 = por %p123, %p124
      %p126 = scmp.ne.s32.totalorder %s115, %s116
      %p127 = scmp.eq.s32.totalorder %s18, 0
      %p128 = por %p126, %p127
      %p129 = scmp.ne.s32.totalorder %s115, %s116
      %p130 = scmp.eq.s32.totalorder %s19, 1
      %p131 = por %p129, %p130
      %p133 = scmp.ne.s32.totalorder %s116, %s132
      %p134 = scmp.eq.s32.totalorder %s19, 0
      %p135 = por %p133, %p134
      %p136 = scmp.le.s32.totalorder 1, %s13
      %p137 = scmp.lt.s32.totalorder %s13, 3
      %p138 = pnand %p136, %p137
      %p139 = pneg %p138
      // Predicated region
      $region9: #{tpu_custom_call.1} parent=5 // pred_check
        _
      $region10: #{tpu_custom_call.1} parent=5 // pred_check_branch
        %141 = sbr.rel (%p138) target = $region12
      $region11: #{tpu_custom_call.1} parent=5 // pred_region
        %s142 = ssub.s32 %s13, 1
        // Predicated region
        $region13: #{tpu_custom_call.1} parent=11 // pred_check
          %p143 = pneg %p60
        $region14: #{tpu_custom_call.1} parent=11 // pred_check_branch
          %145 = sbr.rel (%p143) target = $region16
        $region15: #{tpu_custom_call.1} parent=11 // pred_region
          _
        $region16: #{tpu_custom_call.1} parent=11 // pred_fallthru
          _
        // Predicated region
        $region17: #{tpu_custom_call.1} parent=11 // pred_check
          %p146 = pneg %p81
        $region18: #{tpu_custom_call.1} parent=11 // pred_check_branch
          %148 = sbr.rel (%p146) target = $region20
        $region19: #{tpu_custom_call.1} parent=11 // pred_region
          _
        $region20: #{tpu_custom_call.1} parent=11 // pred_fallthru
          _
        // Predicated region
        $region21: #{tpu_custom_call.1} parent=11 // pred_check
          %p149 = pneg %p102
        $region22: #{tpu_custom_call.1} parent=11 // pred_check_branch
          %151 = sbr.rel (%p149) target = $region24
        $region23: #{tpu_custom_call.1} parent=11 // pred_region
          _
        $region24: #{tpu_custom_call.1} parent=11 // pred_fallthru
          _
      $region12: #{tpu_custom_call.1} parent=5 // pred_fallthru
        _
      %p152 = scmp.lt.s32.totalorder %s13, 2
      // Predicated region
      $region25: #{tpu_custom_call.1} parent=5 // pred_check
        %p153 = pneg %p152
      $region26: #{tpu_custom_call.1} parent=5 // pred_check_branch
        %155 = sbr.rel (%p153) target = $region28
      $region27: #{tpu_custom_call.1} parent=5 // pred_region
        // Predicated region
        $region29: #{tpu_custom_call.1} parent=27 // pred_check
          %p156 = pneg %p33
        $region30: #{tpu_custom_call.1} parent=27 // pred_check_branch
          %158 = sbr.rel (%p156) target = $region32
        $region31: #{tpu_custom_call.1} parent=27 // pred_region
          %s159 = smul.u32 2, %s13
          %p160 = scmp.lt.s32.totalorder %s159, 3
          %s161 = scalar_select %p160, %s159, 3
          %s162 = smul.addr %s161, 2
          %s163 = smul.addr %s162, 8
          %s164 = scalar_lea.vmem %s0, %s163
          %s165 = smul.u32 2, %s13
        $region32: #{tpu_custom_call.1} parent=27 // pred_fallthru
          _
      $region28: #{tpu_custom_call.1} parent=5 // pred_fallthru
        _
      %p166 = scmp.le.s32.totalorder 1, %s13
      %p167 = scmp.lt.s32.totalorder %s13, 3
      %p168 = pnand %p166, %p167
      %p169 = pneg %p168
      // Predicated region
      $region33: #{tpu_custom_call.1} parent=5 // pred_check
        _
      $region34: #{tpu_custom_call.1} parent=5 // pred_check_branch
        %171 = sbr.rel (%p168) target = $region36
      $region35: #{tpu_custom_call.1} parent=5 // pred_region
        %s172 = ssub.s32 %s13, 1
        %s173 = smul.u32 2, %s18
        %p174 = scmp.lt.s32.totalorder %s173, 3
        %s175 = scalar_select %p174, %s173, 3
        %s176 = smul.addr %s175, 2
        %s177 = smul.addr %s176, 8
        %s178 = scalar_lea.vmem %s0, %s177
        %p179 = pneg %p39
        %p180 = pneg %p36
        %p181 = pneg %p60
        %p182 = pneg %p57
        %p183 = pneg %p81
        %p184 = pneg %p78
        %p185 = pneg %p102
        %p186 = pneg %p99
        %p187 = pneg %p128
        %p188 = pneg %p125
        %s189 = sand.u32 %s115, 1
        %s190 = scalar_lea.sflag [#allocation3], %s189
        %s191 = sand.u32 %s115, 1
        %s192 = smul.addr %s191, 8
        %s193 = scalar_lea.vmem [#allocation2], %s192
        %s194 = smul.u32 2, %s18
        %p195 = scmp.lt.s32.totalorder %s194, 3
        %s196 = scalar_select %p195, %s194, 3
        %s197 = smul.addr %s196, 2
        %s198 = smul.addr %s197, 8
        %s199 = scalar_lea.vmem %s0, %s198
        %s200 = smul.u32 2, %s18
        %s201 = smul.u32 2, %s18
        %v202 = vlaneseq
        %v203 = vshrl.u32 %v202, 7
        %v204 = vadd.s32 %v203, 8
        %v205 = vshra.s32 %v203, 3
        %v206 = vshra.s32 %v204, 3
        %v207 = vand.u32 %v205, 1
        %v208 = vand.u32 %v206, 1
        %v209 = vshra.s32 %v203, 2
        %v210 = vshra.s32 %v204, 2
        %v211 = vand.u32 %v209, 1
        %v212 = vand.u32 %v210, 1
        %v213 = vshra.s32 %v203, 1
        %v214 = vshra.s32 %v204, 1
        %v215 = vand.u32 %v213, 1
        %v216 = vand.u32 %v214, 1
        %v217 = vand.u32 %v203, 1
        %v218 = vand.u32 %v204, 1
        %vm219 = vcmp.eq.s32.totalorder %v207, 0
        %vm220 = vcmp.eq.s32.totalorder %v208, 0
        %vm221 = vcmp.eq.s32.totalorder %v211, 0
        %vm222 = vcmp.eq.s32.totalorder %v212, 0
        %vm223 = vcmp.eq.s32.totalorder %v215, 0
        %vm224 = vcmp.eq.s32.totalorder %v216, 0
        %vm225 = vcmp.eq.s32.totalorder %v217, 0
        %vm226 = vcmp.eq.s32.totalorder %v218, 0
        %v227 = vmul.u32 %v207, 2
        %v228 = vmul.u32 %v208, 2
        %v229 = vsub.s32 1, %v227
        %v230 = vsub.s32 1, %v228
        %v231 = vcvt.s32.f32 %v229
        %v232 = vcvt.s32.f32 %v230
        %v233 = vmul.u32 %v211, 2
        %v234 = vmul.u32 %v212, 2
        %v235 = vsub.s32 1, %v233
        %v236 = vsub.s32 1, %v234
        %v237 = vcvt.s32.f32 %v235
        %v238 = vcvt.s32.f32 %v236
        %v239 = vmul.u32 %v215, 2
        %v240 = vmul.u32 %v216, 2
        %v241 = vsub.s32 1, %v239
        %v242 = vsub.s32 1, %v240
        %v243 = vcvt.s32.f32 %v241
        %v244 = vcvt.s32.f32 %v242
        %v245 = vmul.u32 %v217, 2
        %v246 = vmul.u32 %v218, 2
        %v247 = vsub.s32 1, %v245
        %v248 = vsub.s32 1, %v246
        %v249 = vcvt.s32.f32 %v247
        %v250 = vcvt.s32.f32 %v248
        loop: start=0, step=1, limit=2
        $region37: #{tpu_custom_call.1} parent=35 // loop_pre_header
          _
        $region38: #{tpu_custom_call.1} parent=35 // loop_header
          %s252 = sphi 0, %s256
          %p253 = scmp.ge.s32.totalorder %s252, 2
        $region39: #{tpu_custom_call.1} parent=35 // loop_header_branch
          %255 = sbr.rel (%p253) target = $region43
        $region40: #{tpu_custom_call.1} parent=35 // loop_body
          %s257 = smul.u32 %s252, 16
          %s258 = scalar_lea.vmem %s199, %s257
          %v259 = vld [vmem:[%s258] sm:$0xff]
          %v260 = vld [vmem:[%s258 + $0x8] sm:$0xf]
          %v261 = vmul.f32 %v259, 0.5
          %v262 = vmul.f32 %v260, 0.5
          %v263 = vand.u32 2147483647, %v261
          %vm264 = vcmp.le.f32.partialorder %v263, 0.7853982
          %vm265 = vcmp.lt.s32.totalorder %v261, 0
          %v266 = vand.u32 %v261, 2139095040
          %v267 = vshrl.u32 %v266, 23
          %v268 = vsub.s32 %v267, 127
          %v269 = vand.u32 2147483647, %v261
          %v270 = vand.u32 %v269, 8388607
          %v271 = vor.u32 %v270, 8388608
          %v272 = vsub.s32 0, %v271
          %v273 = vadd.s32 %v268, 1
          %vm274 = vcmp.gt.s32.totalorder %v273, 0
          %v275 = vsel %vm274, %v273, 0
          %v276 = vshrl.u32 %v275, 5
          %v277 = vand.u32 %v275, 31
          %v278 = vsub.s32 32, %v277
          %v279 = vshrl.u32 683565275, %v278
          %v280 = vshll.u32 683565275, %v277
          %v281 = vshrl.u32 2475754826, %v278
          %v282 = vor.u32 %v280, %v281
          %v283 = vshll.u32 2475754826, %v277
          %v284 = vshrl.u32 2131351028, %v278
          %v285 = vor.u32 %v283, %v284
          %v286 = vshll.u32 2131351028, %v277
          %v287 = vshrl.u32 2102212464, %v278
          %v288 = vor.u32 %v286, %v287
          %v289 = vshll.u32 2102212464, %v277
          %v290 = vshrl.u32 920167782, %v278
          %v291 = vor.u32 %v289, %v290
          %v292 = vshll.u32 920167782, %v277
          %v293 = vshrl.u32 1326507024, %v278
          %v294 = vor.u32 %v292, %v293
          %vm295 = vcmp.lt.s32.totalorder %v276, 1
          %vm296 = vcmp.lt.s32.totalorder %v276, 2
          %vm297 = vcmp.lt.s32.totalorder %v276, 3
          %vm298 = vcmp.lt.s32.totalorder %v276, 4
          %v299 = vsel %vm295, %v279, %v282
          %v300 = vsel %vm298, %v288, 2102212464
          %v301 = vsel %vm297, %v285, %v300
          %v302 = vsel %vm296, %v299, %v301
          %v303 = vsel %vm295, %v282, %v285
          %v304 = vsel %vm298, %v291, 920167782
          %v305 = vsel %vm297, %v288, %v304
          %v306 = vsel %vm296, %v303, %v305
          %v307 = vsel %vm295, %v285, %v288
          %v308 = vsel %vm298, %v294, 1326507024
          %v309 = vsel %vm297, %v291, %v308
          %v310 = vsel %vm296, %v307, %v309
          %v311 = vshll.u32 %v271, 8
          %v312 = vmul.u32.u64.compose %v311, %v310
          %v313 = vextract.low.u32 %v312
          %v314 = vextract.high.u32 %v312
          %v315 = vmul.u32.u64.compose %v311, %v306
          %v316 = vextract.low.u32 %v315
          %v317 = vextract.high.u32 %v315
          %v318 = vmul.u32 %v311, %v302
          %v319 = vadd.s32 %v314, %v316
          %vm320 = vc.u32 %v314, %v316
          %v321 = vadd.s32 %v317, 1
          %v322 = vsel %vm320, %v321, %v317
          %v323 = vadd.s32 %v318, %v322
          %v324 = vadd.s32 %v323, 536870912
          %v325 = vshrl.u32 %v324, 30
          %v326 = vshll.u32 %v325, 30
          %v327 = vsub.s32 %v323, %v326
          %vm328 = vcmp.lt.s32.totalorder %v327, 0
          %v329 = vsub.s32 0, %v327
          %v330 = vsel %vm328, %v329, %v327
          %v331 = vclz %v330
          %v332 = vsub.s32 %v331, 2
          %vm333 = vcmp.gt.s32.totalorder 0, %v332
          %v334 = vsel %vm333, 0, %v332
          %v335 = vsub.s32 32, %v334
          %v336 = vshll.u32 %v327, %v334
          %v337 = vshrl.u32 %v319, %v335
          %v338 = vor.u32 %v336, %v337
          %v339 = vsub.s32 4294967266, %v334
          %v340 = vadd.s32 %v339, 127
          %v341 = vshll.u32 %v340, 23
          %v342 = vor.u32 4788187, %v341
          %v343 = vand.u32 2147483647, %v342
          %v345 = vcvt.s32.f32 %v338
          %v346 = vmul.f32 %v345, %v343
          %v347 = vxor.u32 %v346, 2147483648
          %v348 = vsel %vm265, %v347, %v346
          %v349 = vsub.s32 4, %v325
          %v350 = vsel %vm265, %v349, %v325
          %v351 = vsel %vm264, %v261, %v348
          %v352 = vsel %vm264, 0, %v350
          %v353 = vcosq.f32.pop %v351
          %v354 = vsinq.f32.pop %v351
          %vm355 = vweird.f32 %v261
          %v356 = vand.u32 %v352, 3
          %vm357 = vcmp.lt.s32.totalorder %v356, 2
          %vm358 = vcmp.eq.s32.totalorder %v356, 0
          %v359 = vxor.u32 %v354, 2147483648
          %v360 = vsel %vm358, %v353, %v359
          %vm361 = vcmp.eq.s32.totalorder %v356, 2
          %v362 = vxor.u32 %v353, 2147483648
          %v363 = vsel %vm361, %v362, %v354
          %v364 = vsel %vm357, %v360, %v363
          %v365 = vsel %vm355, nan, %v364
          %v366 = vand.u32 2147483647, %v262
          %vm367 = vcmp.le.f32.partialorder %v366, 0.7853982
          %vm368 = vcmp.lt.s32.totalorder %v262, 0
          %v369 = vand.u32 %v262, 2139095040
          %v370 = vshrl.u32 %v369, 23
          %v371 = vsub.s32 %v370, 127
          %v372 = vand.u32 2147483647, %v262
          %v373 = vand.u32 %v372, 8388607
          %v374 = vor.u32 %v373, 8388608
          %v375 = vsub.s32 0, %v374
          %v376 = vadd.s32 %v371, 1
          %vm377 = vcmp.gt.s32.totalorder %v376, 0
          %v378 = vsel %vm377, %v376, 0
          %v379 = vshrl.u32 %v378, 5
          %v380 = vand.u32 %v378, 31
          %v381 = vsub.s32 32, %v380
          %v382 = vshrl.u32 683565275, %v381
          %v383 = vshll.u32 683565275, %v380
          %v384 = vshrl.u32 2475754826, %v381
          %v385 = vor.u32 %v383, %v384
          %v386 = vshll.u32 2475754826, %v380
          %v387 = vshrl.u32 2131351028, %v381
          %v388 = vor.u32 %v386, %v387
          %v389 = vshll.u32 2131351028, %v380
          %v390 = vshrl.u32 2102212464, %v381
          %v391 = vor.u32 %v389, %v390
          %v392 = vshll.u32 2102212464, %v380
          %v393 = vshrl.u32 920167782, %v381
          %v394 = vor.u32 %v392, %v393
          %v395 = vshll.u32 920167782, %v380
          %v396 = vshrl.u32 1326507024, %v381
          %v397 = vor.u32 %v395, %v396
          %vm398 = vcmp.lt.s32.totalorder %v379, 1
          %vm399 = vcmp.lt.s32.totalorder %v379, 2
          %vm400 = vcmp.lt.s32.totalorder %v379, 3
          %vm401 = vcmp.lt.s32.totalorder %v379, 4
          %v402 = vsel %vm398, %v382, %v385
          %v403 = vsel %vm401, %v391, 2102212464
          %v404 = vsel %vm400, %v388, %v403
          %v405 = vsel %vm399, %v402, %v404
          %v406 = vsel %vm398, %v385, %v388
          %v407 = vsel %vm401, %v394, 920167782
          %v408 = vsel %vm400, %v391, %v407
          %v409 = vsel %vm399, %v406, %v408
          %v410 = vsel %vm398, %v388, %v391
          %v411 = vsel %vm401, %v397, 1326507024
          %v412 = vsel %vm400, %v394, %v411
          %v413 = vsel %vm399, %v410, %v412
          %v414 = vshll.u32 %v374, 8
          %v415 = vmul.u32.u64.compose %v414, %v413
          %v416 = vextract.low.u32 %v415
          %v417 = vextract.high.u32 %v415
          %v418 = vmul.u32.u64.compose %v414, %v409
          %v419 = vextract.low.u32 %v418
          %v420 = vextract.high.u32 %v418
          %v421 = vmul.u32 %v414, %v405
          %v422 = vadd.s32 %v417, %v419
          %vm423 = vc.u32 %v417, %v419
          %v424 = vadd.s32 %v420, 1
          %v425 = vsel %vm423, %v424, %v420
          %v426 = vadd.s32 %v421, %v425
          %v427 = vadd.s32 %v426, 536870912
          %v428 = vshrl.u32 %v427, 30
          %v429 = vshll.u32 %v428, 30
          %v430 = vsub.s32 %v426, %v429
          %vm431 = vcmp.lt.s32.totalorder %v430, 0
          %v432 = vsub.s32 0, %v430
          %v433 = vsel %vm431, %v432, %v430
          %v434 = vclz %v433
          %v435 = vsub.s32 %v434, 2
          %vm436 = vcmp.gt.s32.totalorder 0, %v435
          %v437 = vsel %vm436, 0, %v435
          %v438 = vsub.s32 32, %v437
          %v439 = vshll.u32 %v430, %v437
          %v440 = vshrl.u32 %v422, %v438
          %v441 = vor.u32 %v439, %v440
          %v442 = vsub.s32 4294967266, %v437
          %v443 = vadd.s32 %v442, 127
          %v444 = vshll.u32 %v443, 23
          %v445 = vor.u32 4788187, %v444
          %v446 = vand.u32 2147483647, %v445
          %v448 = vcvt.s32.f32 %v441
          %v449 = vmul.f32 %v448, %v446
          %v450 = vxor.u32 %v449, 2147483648
          %v451 = vsel %vm368, %v450, %v449
          %v452 = vsub.s32 4, %v428
          %v453 = vsel %vm368, %v452, %v428
          %v454 = vsel %vm367, %v262, %v451
          %v455 = vsel %vm367, 0, %v453
          %v456 = vcosq.f32.pop %v454
          %v457 = vsinq.f32.pop %v454
          %vm458 = vweird.f32 %v262
          %v459 = vand.u32 %v455, 3
          %vm460 = vcmp.lt.s32.totalorder %v459, 2
          %vm461 = vcmp.eq.s32.totalorder %v459, 0
          %v462 = vxor.u32 %v457, 2147483648
          %v463 = vsel %vm461, %v456, %v462
          %vm464 = vcmp.eq.s32.totalorder %v459, 2
          %v465 = vxor.u32 %v456, 2147483648
          %v466 = vsel %vm464, %v465, %v457
          %v467 = vsel %vm460, %v463, %v466
          %v468 = vsel %vm458, nan, %v467
          %v469 = vand.u32 2147483647, %v261
          %vm470 = vcmp.le.f32.partialorder %v469, 0.7853982
          %vm471 = vcmp.lt.s32.totalorder %v261, 0
          %v472 = vand.u32 %v261, 2139095040
          %v473 = vshrl.u32 %v472, 23
          %v474 = vsub.s32 %v473, 127
          %v475 = vand.u32 2147483647, %v261
          %v476 = vand.u32 %v475, 8388607
          %v477 = vor.u32 %v476, 8388608
          %v478 = vsub.s32 0, %v477
          %v479 = vadd.s32 %v474, 1
          %vm480 = vcmp.gt.s32.totalorder %v479, 0
          %v481 = vsel %vm480, %v479, 0
          %v482 = vshrl.u32 %v481, 5
          %v483 = vand.u32 %v481, 31
          %v484 = vsub.s32 32, %v483
          %v485 = vshrl.u32 683565275, %v484
          %v486 = vshll.u32 683565275, %v483
          %v487 = vshrl.u32 2475754826, %v484
          %v488 = vor.u32 %v486, %v487
          %v489 = vshll.u32 2475754826, %v483
          %v490 = vshrl.u32 2131351028, %v484
          %v491 = vor.u32 %v489, %v490
          %v492 = vshll.u32 2131351028, %v483
          %v493 = vshrl.u32 2102212464, %v484
          %v494 = vor.u32 %v492, %v493
          %v495 = vshll.u32 2102212464, %v483
          %v496 = vshrl.u32 920167782, %v484
          %v497 = vor.u32 %v495, %v496
          %v498 = vshll.u32 920167782, %v483
          %v499 = vshrl.u32 1326507024, %v484
          %v500 = vor.u32 %v498, %v499
          %vm501 = vcmp.lt.s32.totalorder %v482, 1
          %vm502 = vcmp.lt.s32.totalorder %v482, 2
          %vm503 = vcmp.lt.s32.totalorder %v482, 3
          %vm504 = vcmp.lt.s32.totalorder %v482, 4
          %v505 = vsel %vm501, %v485, %v488
          %v506 = vsel %vm504, %v494, 2102212464
          %v507 = vsel %vm503, %v491, %v506
          %v508 = vsel %vm502, %v505, %v507
          %v509 = vsel %vm501, %v488, %v491
          %v510 = vsel %vm504, %v497, 920167782
          %v511 = vsel %vm503, %v494, %v510
          %v512 = vsel %vm502, %v509, %v511
          %v513 = vsel %vm501, %v491, %v494
          %v514 = vsel %vm504, %v500, 1326507024
          %v515 = vsel %vm503, %v497, %v514
          %v516 = vsel %vm502, %v513, %v515
          %v517 = vshll.u32 %v477, 8
          %v518 = vmul.u32.u64.compose %v517, %v516
          %v519 = vextract.low.u32 %v518
          %v520 = vextract.high.u32 %v518
          %v521 = vmul.u32.u64.compose %v517, %v512
          %v522 = vextract.low.u32 %v521
          %v523 = vextract.high.u32 %v521
          %v524 = vmul.u32 %v517, %v508
          %v525 = vadd.s32 %v520, %v522
          %vm526 = vc.u32 %v520, %v522
          %v527 = vadd.s32 %v523, 1
          %v528 = vsel %vm526, %v527, %v523
          %v529 = vadd.s32 %v524, %v528
          %v530 = vadd.s32 %v529, 536870912
          %v531 = vshrl.u32 %v530, 30
          %v532 = vshll.u32 %v531, 30
          %v533 = vsub.s32 %v529, %v532
          %vm534 = vcmp.lt.s32.totalorder %v533, 0
          %v535 = vsub.s32 0, %v533
          %v536 = vsel %vm534, %v535, %v533
          %v537 = vclz %v536
          %v538 = vsub.s32 %v537, 2
          %vm539 = vcmp.gt.s32.totalorder 0, %v538
          %v540 = vsel %vm539, 0, %v538
          %v541 = vsub.s32 32, %v540
          %v542 = vshll.u32 %v533, %v540
          %v543 = vshrl.u32 %v525, %v541
          %v544 = vor.u32 %v542, %v543
          %v545 = vsub.s32 4294967266, %v540
          %v546 = vadd.s32 %v545, 127
          %v547 = vshll.u32 %v546, 23
          %v548 = vor.u32 4788187, %v547
          %v549 = vand.u32 2147483647, %v548
          %v551 = vcvt.s32.f32 %v544
          %v552 = vmul.f32 %v551, %v549
          %v553 = vxor.u32 %v552, 2147483648
          %v554 = vsel %vm471, %v553, %v552
          %v555 = vsub.s32 4, %v531
          %v556 = vsel %vm471, %v555, %v531
          %v557 = vsel %vm470, %v261, %v554
          %v558 = vsel %vm470, 0, %v556
          %v559 = vcosq.f32.pop %v557
          %v560 = vsinq.f32.pop %v557
          %vm561 = vweird.f32 %v261
          %v562 = vadd.s32 %v558, 3
          %v563 = vand.u32 %v562, 3
          %vm564 = vcmp.lt.s32.totalorder %v563, 2
          %vm565 = vcmp.eq.s32.totalorder %v563, 0
          %v566 = vxor.u32 %v560, 2147483648
          %v567 = vsel %vm565, %v559, %v566
          %vm568 = vcmp.eq.s32.totalorder %v563, 2
          %v569 = vxor.u32 %v559, 2147483648
          %v570 = vsel %vm568, %v569, %v560
          %v571 = vsel %vm564, %v567, %v570
          %v572 = vsel %vm561, nan, %v571
          %v573 = vand.u32 2147483647, %v262
          %vm574 = vcmp.le.f32.partialorder %v573, 0.7853982
          %vm575 = vcmp.lt.s32.totalorder %v262, 0
          %v576 = vand.u32 %v262, 2139095040
          %v577 = vshrl.u32 %v576, 23
          %v578 = vsub.s32 %v577, 127
          %v579 = vand.u32 2147483647, %v262
          %v580 = vand.u32 %v579, 8388607
          %v581 = vor.u32 %v580, 8388608
          %v582 = vsub.s32 0, %v581
          %v583 = vadd.s32 %v578, 1
          %vm584 = vcmp.gt.s32.totalorder %v583, 0
          %v585 = vsel %vm584, %v583, 0
          %v586 = vshrl.u32 %v585, 5
          %v587 = vand.u32 %v585, 31
          %v588 = vsub.s32 32, %v587
          %v589 = vshrl.u32 683565275, %v588
          %v590 = vshll.u32 683565275, %v587
          %v591 = vshrl.u32 2475754826, %v588
          %v592 = vor.u32 %v590, %v591
          %v593 = vshll.u32 2475754826, %v587
          %v594 = vshrl.u32 2131351028, %v588
          %v595 = vor.u32 %v593, %v594
          %v596 = vshll.u32 2131351028, %v587
          %v597 = vshrl.u32 2102212464, %v588
          %v598 = vor.u32 %v596, %v597
          %v599 = vshll.u32 2102212464, %v587
          %v600 = vshrl.u32 920167782, %v588
          %v601 = vor.u32 %v599, %v600
          %v602 = vshll.u32 920167782, %v587
          %v603 = vshrl.u32 1326507024, %v588
          %v604 = vor.u32 %v602, %v603
          %vm605 = vcmp.lt.s32.totalorder %v586, 1
          %vm606 = vcmp.lt.s32.totalorder %v586, 2
          %vm607 = vcmp.lt.s32.totalorder %v586, 3
          %vm608 = vcmp.lt.s32.totalorder %v586, 4
          %v609 = vsel %vm605, %v589, %v592
          %v610 = vsel %vm608, %v598, 2102212464
          %v611 = vsel %vm607, %v595, %v610
          %v612 = vsel %vm606, %v609, %v611
          %v613 = vsel %vm605, %v592, %v595
          %v614 = vsel %vm608, %v601, 920167782
          %v615 = vsel %vm607, %v598, %v614
          %v616 = vsel %vm606, %v613, %v615
          %v617 = vsel %vm605, %v595, %v598
          %v618 = vsel %vm608, %v604, 1326507024
          %v619 = vsel %vm607, %v601, %v618
          %v620 = vsel %vm606, %v617, %v619
          %v621 = vshll.u32 %v581, 8
          %v622 = vmul.u32.u64.compose %v621, %v620
          %v623 = vextract.low.u32 %v622
          %v624 = vextract.high.u32 %v622
          %v625 = vmul.u32.u64.compose %v621, %v616
          %v626 = vextract.low.u32 %v625
          %v627 = vextract.high.u32 %v625
          %v628 = vmul.u32 %v621, %v612
          %v629 = vadd.s32 %v624, %v626
          %vm630 = vc.u32 %v624, %v626
          %v631 = vadd.s32 %v627, 1
          %v632 = vsel %vm630, %v631, %v627
          %v633 = vadd.s32 %v628, %v632
          %v634 = vadd.s32 %v633, 536870912
          %v635 = vshrl.u32 %v634, 30
          %v636 = vshll.u32 %v635, 30
          %v637 = vsub.s32 %v633, %v636
          %vm638 = vcmp.lt.s32.totalorder %v637, 0
          %v639 = vsub.s32 0, %v637
          %v640 = vsel %vm638, %v639, %v637
          %v641 = vclz %v640
          %v642 = vsub.s32 %v641, 2
          %vm643 = vcmp.gt.s32.totalorder 0, %v642
          %v644 = vsel %vm643, 0, %v642
          %v645 = vsub.s32 32, %v644
          %v646 = vshll.u32 %v637, %v644
          %v647 = vshrl.u32 %v629, %v645
          %v648 = vor.u32 %v646, %v647
          %v649 = vsub.s32 4294967266, %v644
          %v650 = vadd.s32 %v649, 127
          %v651 = vshll.u32 %v650, 23
          %v652 = vor.u32 4788187, %v651
          %v653 = vand.u32 2147483647, %v652
          %v655 = vcvt.s32.f32 %v648
          %v656 = vmul.f32 %v655, %v653
          %v657 = vxor.u32 %v656, 2147483648
          %v658 = vsel %vm575, %v657, %v656
          %v659 = vsub.s32 4, %v635
          %v660 = vsel %vm575, %v659, %v635
          %v661 = vsel %vm574, %v262, %v658
          %v662 = vsel %vm574, 0, %v660
          %v663 = vcosq.f32.pop %v661
          %v664 = vsinq.f32.pop %v661
          %vm665 = vweird.f32 %v262
          %v666 = vadd.s32 %v662, 3
          %v667 = vand.u32 %v666, 3
          %vm668 = vcmp.lt.s32.totalorder %v667, 2
          %vm669 = vcmp.eq.s32.totalorder %v667, 0
          %v670 = vxor.u32 %v664, 2147483648
          %v671 = vsel %vm669, %v663, %v670
          %vm672 = vcmp.eq.s32.totalorder %v667, 2
          %v673 = vxor.u32 %v663, 2147483648
          %v674 = vsel %vm672, %v673, %v664
          %v675 = vsel %vm668, %v671, %v674
          %v676 = vsel %vm665, nan, %v675
          %v678 = vrot.slane %v365, 2
          %v680 = vmul.f32 %v365, %v678
          %v682 = vrot.slane %v572, 2
          %v684 = vmul.f32 %v572, %v682
          %v685 = vsub.f32 %v680, %v684
          %v686 = vmul.f32 %v572, %v678
          %v687 = vmul.f32 %v365, %v682
          %v688 = vadd.f32 %v686, %v687
          %v689 = vadd.f32 %v680, %v684
          %v690 = vsub.f32 %v686, %v687
          %v691 = vrot.slane %v365, 1
          %v693 = vmul.f32 %v685, %v691
          %v694 = vmul.f32 %v688, %v691
          %v695 = vsub.f32 0.0, %v694
          %v696 = vrot.slane %v572, 1
          %v698 = vmul.f32 %v689, %v696
          %v699 = vsub.f32 0.0, %v698
          %v700 = vmul.f32 %v690, %v696
          %v701 = vsub.f32 0.0, %v700
          %v703 = vrot.slane %v468, 2
          %v705 = vmul.f32 %v365, %v703
          %v707 = vrot.slane %v676, 2
          %v709 = vmul.f32 %v572, %v707
          %v710 = vsub.f32 %v705, %v709
          %v711 = vmul.f32 %v572, %v703
          %v712 = vmul.f32 %v365, %v707
          %v713 = vadd.f32 %v711, %v712
          %v714 = vadd.f32 %v705, %v709
          %v715 = vsub.f32 %v711, %v712
          %v716 = vmul.f32 %v710, %v691
          %v717 = vmul.f32 %v713, %v691
          %v718 = vsub.f32 0.0, %v717
          %v719 = vmul.f32 %v714, %v696
          %v720 = vsub.f32 0.0, %v719
          %v721 = vmul.f32 %v715, %v696
          %v722 = vsub.f32 0.0, %v721
          %v723 = vmul.f32 %v468, %v703
          %v724 = vmul.f32 %v676, %v707
          %v725 = vsub.f32 %v723, %v724
          %v726 = vmul.f32 %v676, %v703
          %v727 = vmul.f32 %v468, %v707
          %v728 = vadd.f32 %v726, %v727
          %v729 = vadd.f32 %v723, %v724
          %v730 = vsub.f32 %v726, %v727
          %v731 = vrot.slane %v468, 1
          %v733 = vmul.f32 %v725, %v731
          %v734 = vmul.f32 %v728, %v731
          %v735 = vsub.f32 0.0, %v734
          %v736 = vrot.slane %v676, 1
          %v738 = vmul.f32 %v729, %v736
          %v739 = vsub.f32 0.0, %v738
          %v740 = vmul.f32 %v730, %v736
          %v741 = vsub.f32 0.0, %v740
          %v742 = vsub.f32 0.0, %v699
          %v743 = vsel %vm219, 1, 0
          %v744 = vsel %vm220, 1, 0
          %vm745 = vcmp.eq.s32.totalorder %v743, 1
          %vm746 = vcmp.eq.s32.totalorder %v744, 1
          %v747 = vlaneseq
          %v748 = vshrl.u32 %v747, 7
          %v749 = vsub.s32 0, %v748
          %v750 = vrot.slane %v693, %v749
          %v751 = vlaneseq
          %v752 = vshrl.u32 %v751, 7
          %v753 = vsub.s32 0, %v752
          %v754 = vrot.slane %v742, %v753
          %v755 = vsel %vm745, %v750, %v754
          %v756 = vsel %vm746, %v750, %v754
          %v757 = vlaneseq
          %v758 = vshrl.u32 %v757, 7
          %v759 = vsub.s32 0, %v758
          %v760 = vrot.slane %v695, %v759
          %v761 = vlaneseq
          %v762 = vshrl.u32 %v761, 7
          %v763 = vsub.s32 0, %v762
          %v764 = vrot.slane %v701, %v763
          %v765 = vsel %vm745, %v760, %v764
          %v766 = vsel %vm746, %v760, %v764
          %v767 = vsel %vm221, 1, 0
          %v768 = vsel %vm222, 1, 0
          %vm769 = vcmp.eq.s32.totalorder %v767, 1
          %vm770 = vcmp.eq.s32.totalorder %v768, 1
          %v771 = vlaneseq
          %v772 = vshrl.u32 %v771, 7
          %v773 = vsub.s32 3, %v772
          %v774 = vrot.slane %v693, %v773
          %v775 = vlaneseq
          %v776 = vshrl.u32 %v775, 7
          %v777 = vsub.s32 3, %v776
          %v778 = vrot.slane %v742, %v777
          %v779 = vsel %vm769, %v774, %v778
          %v780 = vsel %vm770, %v774, %v778
          %v781 = vlaneseq
          %v782 = vshrl.u32 %v781, 7
          %v783 = vsub.s32 3, %v782
          %v784 = vrot.slane %v695, %v783
          %v785 = vlaneseq
          %v786 = vshrl.u32 %v785, 7
          %v787 = vsub.s32 3, %v786
          %v788 = vrot.slane %v701, %v787
          %v789 = vsel %vm769, %v784, %v788
          %v790 = vsel %vm770, %v784, %v788
          %v791 = vmul.f32 %v755, %v779
          %v792 = vmul.f32 %v756, %v780
          %v793 = vmul.f32 %v765, %v789
          %v794 = vmul.f32 %v766, %v790
          %v795 = vsub.f32 %v791, %v793
          %v796 = vsub.f32 %v792, %v794
          %v797 = vmul.f32 %v755, %v789
          %v798 = vmul.f32 %v756, %v790
          %v799 = vmul.f32 %v765, %v779
          %v800 = vmul.f32 %v766, %v780
          %v801 = vadd.f32 %v797, %v799
          %v802 = vadd.f32 %v798, %v800
          %v803 = vsub.f32 0.0, %v720
          %v804 = vsel %vm223, 1, 0
          %v805 = vsel %vm224, 1, 0
          %vm806 = vcmp.eq.s32.totalorder %v804, 1
          %vm807 = vcmp.eq.s32.totalorder %v805, 1
          %v808 = vlaneseq
          %v809 = vshrl.u32 %v808, 7
          %v810 = vsub.s32 6, %v809
          %v811 = vrot.slane %v716, %v810
          %v812 = vlaneseq
          %v813 = vshrl.u32 %v812, 7
          %v814 = vsub.s32 6, %v813
          %v815 = vrot.slane %v803, %v814
          %v816 = vsel %vm806, %v811, %v815
          %v817 = vsel %vm807, %v811, %v815
          %v818 = vlaneseq
          %v819 = vshrl.u32 %v818, 7
          %v820 = vsub.s32 6, %v819
          %v821 = vrot.slane %v718, %v820
          %v822 = vlaneseq
          %v823 = vshrl.u32 %v822, 7
          %v824 = vsub.s32 6, %v823
          %v825 = vrot.slane %v722, %v824
          %v826 = vsel %vm806, %v821, %v825
          %v827 = vsel %vm807, %v821, %v825
          %v828 = vmul.f32 %v795, %v816
          %v829 = vmul.f32 %v796, %v817
          %v830 = vmul.f32 %v801, %v826
          %v831 = vmul.f32 %v802, %v827
          %v832 = vsub.f32 %v828, %v830
          %v833 = vsub.f32 %v829, %v831
          %v834 = vmul.f32 %v795, %v826
          %v835 = vmul.f32 %v796, %v827
          %v836 = vmul.f32 %v801, %v816
          %v837 = vmul.f32 %v802, %v817
          %v838 = vadd.f32 %v834, %v836
          %v839 = vadd.f32 %v835, %v837
          %v840 = vsub.f32 0.0, %v739
          %v841 = vsel %vm225, 1, 0
          %v842 = vsel %vm226, 1, 0
          %vm843 = vcmp.eq.s32.totalorder %v841, 1
          %vm844 = vcmp.eq.s32.totalorder %v842, 1
          %v845 = vlaneseq
          %v846 = vshrl.u32 %v845, 7
          %v847 = vsub.s32 1, %v846
          %v848 = vrot.slane %v733, %v847
          %v849 = vlaneseq
          %v850 = vshrl.u32 %v849, 7
          %v851 = vsub.s32 1, %v850
          %v852 = vrot.slane %v840, %v851
          %v853 = vsel %vm843, %v848, %v852
          %v854 = vsel %vm844, %v848, %v852
          %v855 = vlaneseq
          %v856 = vshrl.u32 %v855, 7
          %v857 = vsub.s32 1, %v856
          %v858 = vrot.slane %v735, %v857
          %v859 = vlaneseq
          %v860 = vshrl.u32 %v859, 7
          %v861 = vsub.s32 1, %v860
          %v862 = vrot.slane %v741, %v861
          %v863 = vsel %vm843, %v858, %v862
          %v864 = vsel %vm844, %v858, %v862
          %v865 = vmul.f32 %v832, %v853
          %v866 = vmul.f32 %v833, %v854
          %v867 = vmul.f32 %v838, %v863
          %v868 = vmul.f32 %v839, %v864
          %v869 = vsub.f32 %v865, %v867
          %v870 = vsub.f32 %v866, %v868
          %v871 = vmul.f32 %v832, %v863
          %v872 = vmul.f32 %v833, %v864
          %v873 = vmul.f32 %v838, %v853
          %v874 = vmul.f32 %v839, %v854
          %v875 = vadd.f32 %v871, %v873
          %v876 = vadd.f32 %v872, %v874
          %v877 = vld [vmem:[%s1] sm:$0xff]
          %v878 = vld [vmem:[%s1 + $0x8] sm:$0xff]
          %v879 = vld [vmem:[%s2] sm:$0xff]
          %v880 = vld [vmem:[%s2 + $0x8] sm:$0xff]
          %vm881 = vcmask 130048
          %v883 = vsel %vm881, %v877, 0
          %v886 = vsel %vm881, %v878, 0
          %888 = vmatprep.subr.mxu0 0.0
          %889 = vmatpush1.msra.mxu0 0.0
          %890 = vmatprep.subr.mxu0 0.0
          %891 = vmatpush1.msra.mxu0 0.0
          %892 = vmatprep.subr.mxu0 0.0
          %893 = vmatpush1.msra.mxu0 0.0
          %894 = vmatprep.subr.mxu0 0.0
          %895 = vmatpush1.msra.mxu0 0.0
          %896 = vmatprep.subr.mxu0 0.0
          %897 = vmatpush1.msra.mxu0 0.0
          %898 = vmatprep.subr.mxu0 0.0
          %899 = vmatpush1.msra.mxu0 0.0
          %900 = vmatprep.subr.mxu0 0.0
          %901 = vmatpush1.msra.mxu0 0.0
          %902 = vmatprep.subr.mxu0 0.0
          %903 = vmatpush1.msra.mxu0 0.0
          %904 = vmatprep.subr.mxu0 0.0
          %905 = vmatpush1.msra.mxu0 0.0
          %906 = vmatprep.subr.mxu0 0.0
          %907 = vmatpush1.msra.mxu0 0.0
          %908 = vmatprep.subr.mxu0 0.0
          %909 = vmatpush1.msra.mxu0 0.0
          %910 = vmatprep.subr.mxu0 0.0
          %911 = vmatpush1.msra.mxu0 0.0
          %912 = vmatprep.subr.mxu0 0.0
          %913 = vmatpush1.msra.mxu0 0.0
          %914 = vmatprep.subr.mxu0 0.0
          %915 = vmatpush1.msra.mxu0 0.0
          %916 = vmatprep.subr.mxu0 0.0
          %917 = vmatpush1.msra.mxu0 %v870
          %918 = vmatprep.subr.mxu0 0.0
          %919 = vmatpush1.msra.mxu0 %v869
          %920 = vmatprep.subr.mxu0 0.0
          %921 = vmatpush2.msra.mxu0 0.0
          %922 = vmatprep.subr.mxu0 0.0
          %923 = vmatpush2.msra.mxu0 0.0
          %924 = vmatprep.subr.mxu0 0.0
          %925 = vmatpush2.msra.mxu0 0.0
          %926 = vmatprep.subr.mxu0 0.0
          %927 = vmatpush2.msra.mxu0 0.0
          %928 = vmatprep.subr.mxu0 0.0
          %929 = vmatpush2.msra.mxu0 0.0
          %930 = vmatprep.subr.mxu0 0.0
          %931 = vmatpush2.msra.mxu0 0.0
          %932 = vmatprep.subr.mxu0 0.0
          %933 = vmatpush2.msra.mxu0 0.0
          %934 = vmatprep.subr.mxu0 0.0
          %935 = vmatpush2.msra.mxu0 0.0
          %936 = vmatprep.subr.mxu0 0.0
          %937 = vmatpush2.msra.mxu0 0.0
          %938 = vmatprep.subr.mxu0 0.0
          %939 = vmatpush2.msra.mxu0 0.0
          %940 = vmatprep.subr.mxu0 0.0
          %941 = vmatpush2.msra.mxu0 0.0
          %942 = vmatprep.subr.mxu0 0.0
          %943 = vmatpush2.msra.mxu0 0.0
          %944 = vmatprep.subr.mxu0 0.0
          %945 = vmatpush2.msra.mxu0 0.0
          %946 = vmatprep.subr.mxu0 0.0
          %947 = vmatpush2.msra.mxu0 0.0
          %948 = vmatprep.subr.mxu0 0.0
          %949 = vmatpush2.msra.mxu0 0.0
          %950 = vmatprep.subr.mxu0 0.0
          %951 = vmatpush2.msra.mxu0 0.0
          %952 = vmatprep.mubr.f32.mxu0 0.0
          %953 = vmatmul.mubr.f32.gmra.mxu0 %v883
          %v954 = vpop.f32.mrf.mxu0
          %v955 = vadd.f32 0.0, %v954
          %v956 = vpop.f32.mrf.mxu0
          %957 = vmatprep.mubr.f32.mxu0 0.0
          %958 = vmatmul.mubr.f32.gmra.mxu0 %v886
          %v959 = vpop.f32.mrf.mxu0
          %v960 = vadd.f32 0.0, %v959
          %v961 = vpop.f32.mrf.mxu0
          %962 = vdwg.mxu0
          %v964 = vsel %vm881, %v879, 0
          %v967 = vsel %vm881, %v880, 0
          %969 = vmatprep.subr.mxu0 0.0
          %970 = vmatpush1.msra.mxu0 0.0
          %971 = vmatprep.subr.mxu0 0.0
          %972 = vmatpush1.msra.mxu0 0.0
          %973 = vmatprep.subr.mxu0 0.0
          %974 = vmatpush1.msra.mxu0 0.0
          %975 = vmatprep.subr.mxu0 0.0
          %976 = vmatpush1.msra.mxu0 0.0
          %977 = vmatprep.subr.mxu0 0.0
          %978 = vmatpush1.msra.mxu0 0.0
          %979 = vmatprep.subr.mxu0 0.0
          %980 = vmatpush1.msra.mxu0 0.0
          %981 = vmatprep.subr.mxu0 0.0
          %982 = vmatpush1.msra.mxu0 0.0
          %983 = vmatprep.subr.mxu0 0.0
          %984 = vmatpush1.msra.mxu0 0.0
          %985 = vmatprep.subr.mxu0 0.0
          %986 = vmatpush1.msra.mxu0 0.0
          %987 = vmatprep.subr.mxu0 0.0
          %988 = vmatpush1.msra.mxu0 0.0
          %989 = vmatprep.subr.mxu0 0.0
          %990 = vmatpush1.msra.mxu0 0.0
          %991 = vmatprep.subr.mxu0 0.0
          %992 = vmatpush1.msra.mxu0 0.0
          %993 = vmatprep.subr.mxu0 0.0
          %994 = vmatpush1.msra.mxu0 0.0
          %995 = vmatprep.subr.mxu0 0.0
          %996 = vmatpush1.msra.mxu0 0.0
          %997 = vmatprep.subr.mxu0 0.0
          %998 = vmatpush1.msra.mxu0 %v876
          %999 = vmatprep.subr.mxu0 0.0
          %1000 = vmatpush1.msra.mxu0 %v875
          %1001 = vmatprep.subr.mxu0 0.0
          %1002 = vmatpush2.msra.mxu0 0.0
          %1003 = vmatprep.subr.mxu0 0.0
          %1004 = vmatpush2.msra.mxu0 0.0
          %1005 = vmatprep.subr.mxu0 0.0
          %1006 = vmatpush2.msra.mxu0 0.0
          %1007 = vmatprep.subr.mxu0 0.0
          %1008 = vmatpush2.msra.mxu0 0.0
          %1009 = vmatprep.subr.mxu0 0.0
          %1010 = vmatpush2.msra.mxu0 0.0
          %1011 = vmatprep.subr.mxu0 0.0
          %1012 = vmatpush2.msra.mxu0 0.0
          %1013 = vmatprep.subr.mxu0 0.0
          %1014 = vmatpush2.msra.mxu0 0.0
          %1015 = vmatprep.subr.mxu0 0.0
          %1016 = vmatpush2.msra.mxu0 0.0
          %1017 = vmatprep.subr.mxu0 0.0
          %1018 = vmatpush2.msra.mxu0 0.0
          %1019 = vmatprep.subr.mxu0 0.0
          %1020 = vmatpush2.msra.mxu0 0.0
          %1021 = vmatprep.subr.mxu0 0.0
          %1022 = vmatpush2.msra.mxu0 0.0
          %1023 = vmatprep.subr.mxu0 0.0
          %1024 = vmatpush2.msra.mxu0 0.0
          %1025 = vmatprep.subr.mxu0 0.0
          %1026 = vmatpush2.msra.mxu0 0.0
          %1027 = vmatprep.subr.mxu0 0.0
          %1028 = vmatpush2.msra.mxu0 0.0
          %1029 = vmatprep.subr.mxu0 0.0
          %1030 = vmatpush2.msra.mxu0 0.0
          %1031 = vmatprep.subr.mxu0 0.0
          %1032 = vmatpush2.msra.mxu0 0.0
          %1033 = vmatprep.mubr.f32.mxu0 0.0
          %1034 = vmatmul.mubr.f32.gmra.mxu0 %v964
          %v1035 = vpop.f32.mrf.mxu0
          %v1036 = vadd.f32 0.0, %v1035
          %v1037 = vpop.f32.mrf.mxu0
          %1038 = vmatprep.mubr.f32.mxu0 0.0
          %1039 = vmatmul.mubr.f32.gmra.mxu0 %v967
          %v1040 = vpop.f32.mrf.mxu0
          %v1041 = vadd.f32 0.0, %v1040
          %v1042 = vpop.f32.mrf.mxu0
          %1043 = vdwg.mxu0
          %v1044 = vsub.f32 %v955, %v1036
          %v1045 = vsub.f32 %v960, %v1041
          %1046 = vmatprep.subr.mxu0 0.0
          %1047 = vmatpush1.msra.mxu0 0.0
          %1048 = vmatprep.subr.mxu0 0.0
          %1049 = vmatpush1.msra.mxu0 0.0
          %1050 = vmatprep.subr.mxu0 0.0
          %1051 = vmatpush1.msra.mxu0 0.0
          %1052 = vmatprep.subr.mxu0 0.0
          %1053 = vmatpush1.msra.mxu0 0.0
          %1054 = vmatprep.subr.mxu0 0.0
          %1055 = vmatpush1.msra.mxu0 0.0
          %1056 = vmatprep.subr.mxu0 0.0
          %1057 = vmatpush1.msra.mxu0 0.0
          %1058 = vmatprep.subr.mxu0 0.0
          %1059 = vmatpush1.msra.mxu0 0.0
          %1060 = vmatprep.subr.mxu0 0.0
          %1061 = vmatpush1.msra.mxu0 0.0
          %1062 = vmatprep.subr.mxu0 0.0
          %1063 = vmatpush1.msra.mxu0 0.0
          %1064 = vmatprep.subr.mxu0 0.0
          %1065 = vmatpush1.msra.mxu0 0.0
          %1066 = vmatprep.subr.mxu0 0.0
          %1067 = vmatpush1.msra.mxu0 0.0
          %1068 = vmatprep.subr.mxu0 0.0
          %1069 = vmatpush1.msra.mxu0 0.0
          %1070 = vmatprep.subr.mxu0 0.0
          %1071 = vmatpush1.msra.mxu0 0.0
          %1072 = vmatprep.subr.mxu0 0.0
          %1073 = vmatpush1.msra.mxu0 0.0
          %1074 = vmatprep.subr.mxu0 0.0
          %1075 = vmatpush1.msra.mxu0 %v870
          %1076 = vmatprep.subr.mxu0 0.0
          %1077 = vmatpush1.msra.mxu0 %v869
          %1078 = vmatprep.subr.mxu0 0.0
          %1079 = vmatpush2.msra.mxu0 0.0
          %1080 = vmatprep.subr.mxu0 0.0
          %1081 = vmatpush2.msra.mxu0 0.0
          %1082 = vmatprep.subr.mxu0 0.0
          %1083 = vmatpush2.msra.mxu0 0.0
          %1084 = vmatprep.subr.mxu0 0.0
          %1085 = vmatpush2.msra.mxu0 0.0
          %1086 = vmatprep.subr.mxu0 0.0
          %1087 = vmatpush2.msra.mxu0 0.0
          %1088 = vmatprep.subr.mxu0 0.0
          %1089 = vmatpush2.msra.mxu0 0.0
          %1090 = vmatprep.subr.mxu0 0.0
          %1091 = vmatpush2.msra.mxu0 0.0
          %1092 = vmatprep.subr.mxu0 0.0
          %1093 = vmatpush2.msra.mxu0 0.0
          %1094 = vmatprep.subr.mxu0 0.0
          %1095 = vmatpush2.msra.mxu0 0.0
          %1096 = vmatprep.subr.mxu0 0.0
          %1097 = vmatpush2.msra.mxu0 0.0
          %1098 = vmatprep.subr.mxu0 0.0
          %1099 = vmatpush2.msra.mxu0 0.0
          %1100 = vmatprep.subr.mxu0 0.0
          %1101 = vmatpush2.msra.mxu0 0.0
          %1102 = vmatprep.subr.mxu0 0.0
          %1103 = vmatpush2.msra.mxu0 0.0
          %1104 = vmatprep.subr.mxu0 0.0
          %1105 = vmatpush2.msra.mxu0 0.0
          %1106 = vmatprep.subr.mxu0 0.0
          %1107 = vmatpush2.msra.mxu0 0.0
          %1108 = vmatprep.subr.mxu0 0.0
          %1109 = vmatpush2.msra.mxu0 0.0
          %1110 = vmatprep.mubr.f32.mxu0 0.0
          %1111 = vmatmul.mubr.f32.gmra.mxu0 %v964
          %v1112 = vpop.f32.mrf.mxu0
          %v1113 = vadd.f32 0.0, %v1112
          %v1114 = vpop.f32.mrf.mxu0
          %1115 = vmatprep.mubr.f32.mxu0 0.0
          %1116 = vmatmul.mubr.f32.gmra.mxu0 %v967
          %v1117 = vpop.f32.mrf.mxu0
          %v1118 = vadd.f32 0.0, %v1117
          %v1119 = vpop.f32.mrf.mxu0
          %1120 = vdwg.mxu0
          %1121 = vmatprep.subr.mxu0 0.0
          %1122 = vmatpush1.msra.mxu0 0.0
          %1123 = vmatprep.subr.mxu0 0.0
          %1124 = vmatpush1.msra.mxu0 0.0
          %1125 = vmatprep.subr.mxu0 0.0
          %1126 = vmatpush1.msra.mxu0 0.0
          %1127 = vmatprep.subr.mxu0 0.0
          %1128 = vmatpush1.msra.mxu0 0.0
          %1129 = vmatprep.subr.mxu0 0.0
          %1130 = vmatpush1.msra.mxu0 0.0
          %1131 = vmatprep.subr.mxu0 0.0
          %1132 = vmatpush1.msra.mxu0 0.0
          %1133 = vmatprep.subr.mxu0 0.0
          %1134 = vmatpush1.msra.mxu0 0.0
          %1135 = vmatprep.subr.mxu0 0.0
          %1136 = vmatpush1.msra.mxu0 0.0
          %1137 = vmatprep.subr.mxu0 0.0
          %1138 = vmatpush1.msra.mxu0 0.0
          %1139 = vmatprep.subr.mxu0 0.0
          %1140 = vmatpush1.msra.mxu0 0.0
          %1141 = vmatprep.subr.mxu0 0.0
          %1142 = vmatpush1.msra.mxu0 0.0
          %1143 = vmatprep.subr.mxu0 0.0
          %1144 = vmatpush1.msra.mxu0 0.0
          %1145 = vmatprep.subr.mxu0 0.0
          %1146 = vmatpush1.msra.mxu0 0.0
          %1147 = vmatprep.subr.mxu0 0.0
          %1148 = vmatpush1.msra.mxu0 0.0
          %1149 = vmatprep.subr.mxu0 0.0
          %1150 = vmatpush1.msra.mxu0 %v876
          %1151 = vmatprep.subr.mxu0 0.0
          %1152 = vmatpush1.msra.mxu0 %v875
          %1153 = vmatprep.subr.mxu0 0.0
          %1154 = vmatpush2.msra.mxu0 0.0
          %1155 = vmatprep.subr.mxu0 0.0
          %1156 = vmatpush2.msra.mxu0 0.0
          %1157 = vmatprep.subr.mxu0 0.0
          %1158 = vmatpush2.msra.mxu0 0.0
          %1159 = vmatprep.subr.mxu0 0.0
          %1160 = vmatpush2.msra.mxu0 0.0
          %1161 = vmatprep.subr.mxu0 0.0
          %1162 = vmatpush2.msra.mxu0 0.0
          %1163 = vmatprep.subr.mxu0 0.0
          %1164 = vmatpush2.msra.mxu0 0.0
          %1165 = vmatprep.subr.mxu0 0.0
          %1166 = vmatpush2.msra.mxu0 0.0
          %1167 = vmatprep.subr.mxu0 0.0
          %1168 = vmatpush2.msra.mxu0 0.0
          %1169 = vmatprep.subr.mxu0 0.0
          %1170 = vmatpush2.msra.mxu0 0.0
          %1171 = vmatprep.subr.mxu0 0.0
          %1172 = vmatpush2.msra.mxu0 0.0
          %1173 = vmatprep.subr.mxu0 0.0
          %1174 = vmatpush2.msra.mxu0 0.0
          %1175 = vmatprep.subr.mxu0 0.0
          %1176 = vmatpush2.msra.mxu0 0.0
          %1177 = vmatprep.subr.mxu0 0.0
          %1178 = vmatpush2.msra.mxu0 0.0
          %1179 = vmatprep.subr.mxu0 0.0
          %1180 = vmatpush2.msra.mxu0 0.0
          %1181 = vmatprep.subr.mxu0 0.0
          %1182 = vmatpush2.msra.mxu0 0.0
          %1183 = vmatprep.subr.mxu0 0.0
          %1184 = vmatpush2.msra.mxu0 0.0
          %1185 = vmatprep.mubr.f32.mxu0 0.0
          %1186 = vmatmul.mubr.f32.gmra.mxu0 %v883
          %v1187 = vpop.f32.mrf.mxu0
          %v1188 = vadd.f32 %v1113, %v1187
          %v1189 = vpop.f32.mrf.mxu0
          %1190 = vmatprep.mubr.f32.mxu0 0.0
          %1191 = vmatmul.mubr.f32.gmra.mxu0 %v886
          %v1192 = vpop.f32.mrf.mxu0
          %v1193 = vadd.f32 %v1118, %v1192
          %v1194 = vpop.f32.mrf.mxu0
          %1195 = vdwg.mxu0
          %v1196 = vmul.f32 %v231, %v760
          %v1197 = vmul.f32 %v232, %v760
          %v1198 = vlaneseq
          %v1199 = vshrl.u32 %v1198, 7
          %v1200 = vsub.s32 0, %v1199
          %v1201 = vrot.slane %v699, %v1200
          %v1202 = vmul.f32 %v231, %v1201
          %v1203 = vmul.f32 %v232, %v1201
          %v1204 = vmul.f32 %v750, %v1044
          %v1205 = vmul.f32 %v750, %v1045
          %v1206 = vmul.f32 %v1196, %v1188
          %v1207 = vmul.f32 %v1197, %v1193
          %v1208 = vsub.f32 %v1204, %v1206
          %v1209 = vsub.f32 %v1205, %v1207
          %v1210 = vmul.f32 %v1202, %v1045
          %v1211 = vmul.f32 %v1203, %v1044
          %v1212 = vadd.f32 %v1208, %v1210
          %v1213 = vadd.f32 %v1209, %v1211
          %v1214 = vmul.f32 %v764, %v1193
          %v1215 = vmul.f32 %v764, %v1188
          %v1216 = vsub.f32 %v1212, %v1214
          %v1217 = vsub.f32 %v1213, %v1215
          %v1218 = vmul.f32 %v750, %v1188
          %v1219 = vmul.f32 %v750, %v1193
          %v1220 = vmul.f32 %v1196, %v1044
          %v1221 = vmul.f32 %v1197, %v1045
          %v1222 = vadd.f32 %v1218, %v1220
          %v1223 = vadd.f32 %v1219, %v1221
          %v1224 = vmul.f32 %v1202, %v1193
          %v1225 = vmul.f32 %v1203, %v1188
          %v1226 = vadd.f32 %v1222, %v1224
          %v1227 = vadd.f32 %v1223, %v1225
          %v1228 = vmul.f32 %v764, %v1045
          %v1229 = vmul.f32 %v764, %v1044
          %v1230 = vadd.f32 %v1226, %v1228
          %v1231 = vadd.f32 %v1227, %v1229
          %v1232 = vrot.slane %v1216, 4
          %v1233 = vrot.slane %v1217, 4
          %vm1234 = vcmp.lt.s32.totalorder %v203, 4
          %v1235 = vsel %vm1234, %v1232, %v1233
          %v1236 = vsel %vm1234, %v1233, %v1232
          %v1237 = vsel %vm769, %v1235, %v1236
          %v1238 = vsel %vm770, %v1236, %v1235
          %v1239 = vrot.slane %v1230, 4
          %v1240 = vrot.slane %v1231, 4
          %v1241 = vsel %vm1234, %v1239, %v1240
          %v1242 = vsel %vm1234, %v1240, %v1239
          %v1243 = vsel %vm769, %v1241, %v1242
          %v1244 = vsel %vm770, %v1242, %v1241
          %v1245 = vmul.f32 %v237, %v784
          %v1246 = vmul.f32 %v238, %v784
          %v1247 = vlaneseq
          %v1248 = vshrl.u32 %v1247, 7
          %v1249 = vsub.s32 3, %v1248
          %v1250 = vrot.slane %v699, %v1249
          %v1251 = vmul.f32 %v237, %v1250
          %v1252 = vmul.f32 %v238, %v1250
          %v1253 = vmul.f32 %v774, %v1216
          %v1254 = vmul.f32 %v774, %v1217
          %v1255 = vmul.f32 %v1245, %v1230
          %v1256 = vmul.f32 %v1246, %v1231
          %v1257 = vsub.f32 %v1253, %v1255
          %v1258 = vsub.f32 %v1254, %v1256
          %v1259 = vmul.f32 %v1251, %v1237
          %v1260 = vmul.f32 %v1252, %v1238
          %v1261 = vadd.f32 %v1257, %v1259
          %v1262 = vadd.f32 %v1258, %v1260
          %v1263 = vmul.f32 %v788, %v1243
          %v1264 = vmul.f32 %v788, %v1244
          %v1265 = vsub.f32 %v1261, %v1263
          %v1266 = vsub.f32 %v1262, %v1264
          %v1267 = vmul.f32 %v774, %v1230
          %v1268 = vmul.f32 %v774, %v1231
          %v1269 = vmul.f32 %v1245, %v1216
          %v1270 = vmul.f32 %v1246, %v1217
          %v1271 = vadd.f32 %v1267, %v1269
          %v1272 = vadd.f32 %v1268, %v1270
          %v1273 = vmul.f32 %v1251, %v1243
          %v1274 = vmul.f32 %v1252, %v1244
          %v1275 = vadd.f32 %v1271, %v1273
          %v1276 = vadd.f32 %v1272, %v1274
          %v1277 = vmul.f32 %v788, %v1237
          %v1278 = vmul.f32 %v788, %v1238
          %v1279 = vadd.f32 %v1275, %v1277
          %v1280 = vadd.f32 %v1276, %v1278
          %v1281 = vrot.slane %v1265, 2
          %v1282 = vrot.slane %v1266, 2
          %vm1283 = vcmp.lt.s32.totalorder %v203, 6
          %v1284 = vsel %vm1283, %v1281, %v1282
          %v1285 = vsel %vm1283, %v1282, %v1281
          %v1286 = vrot.slane %v1265, 6
          %v1287 = vrot.slane %v1266, 6
          %vm1288 = vcmp.lt.s32.totalorder %v203, 2
          %v1289 = vsel %vm1288, %v1286, %v1287
          %v1290 = vsel %vm1288, %v1287, %v1286
          %v1291 = vsel %vm806, %v1284, %v1290
          %v1292 = vsel %vm807, %v1285, %v1289
          %v1293 = vrot.slane %v1279, 2
          %v1294 = vrot.slane %v1280, 2
          %v1295 = vsel %vm1283, %v1293, %v1294
          %v1296 = vsel %vm1283, %v1294, %v1293
          %v1297 = vrot.slane %v1279, 6
          %v1298 = vrot.slane %v1280, 6
          %v1299 = vsel %vm1288, %v1297, %v1298
          %v1300 = vsel %vm1288, %v1298, %v1297
          %v1301 = vsel %vm806, %v1295, %v1300
          %v1302 = vsel %vm807, %v1296, %v1299
          %v1303 = vmul.f32 %v243, %v821
          %v1304 = vmul.f32 %v244, %v821
          %v1305 = vlaneseq
          %v1306 = vshrl.u32 %v1305, 7
          %v1307 = vsub.s32 6, %v1306
          %v1308 = vrot.slane %v720, %v1307
          %v1309 = vmul.f32 %v243, %v1308
          %v1310 = vmul.f32 %v244, %v1308
          %v1311 = vmul.f32 %v811, %v1265
          %v1312 = vmul.f32 %v811, %v1266
          %v1313 = vmul.f32 %v1303, %v1279
          %v1314 = vmul.f32 %v1304, %v1280
          %v1315 = vsub.f32 %v1311, %v1313
          %v1316 = vsub.f32 %v1312, %v1314
          %v1317 = vmul.f32 %v1309, %v1291
          %v1318 = vmul.f32 %v1310, %v1292
          %v1319 = vadd.f32 %v1315, %v1317
          %v1320 = vadd.f32 %v1316, %v1318
          %v1321 = vmul.f32 %v825, %v1301
          %v1322 = vmul.f32 %v825, %v1302
          %v1323 = vsub.f32 %v1319, %v1321
          %v1324 = vsub.f32 %v1320, %v1322
          %v1325 = vmul.f32 %v811, %v1279
          %v1326 = vmul.f32 %v811, %v1280
          %v1327 = vmul.f32 %v1303, %v1265
          %v1328 = vmul.f32 %v1304, %v1266
          %v1329 = vadd.f32 %v1325, %v1327
          %v1330 = vadd.f32 %v1326, %v1328
          %v1331 = vmul.f32 %v1309, %v1301
          %v1332 = vmul.f32 %v1310, %v1302
          %v1333 = vadd.f32 %v1329, %v1331
          %v1334 = vadd.f32 %v1330, %v1332
          %v1335 = vmul.f32 %v825, %v1291
          %v1336 = vmul.f32 %v825, %v1292
          %v1337 = vadd.f32 %v1333, %v1335
          %v1338 = vadd.f32 %v1334, %v1336
          %v1339 = vrot.slane %v1323, 1
          %v1340 = vrot.slane %v1324, 1
          %vm1341 = vcmp.lt.s32.totalorder %v203, 7
          %v1342 = vsel %vm1341, %v1339, %v1340
          %v1343 = vsel %vm1341, %v1340, %v1339
          %v1344 = vrot.slane %v1323, 7
          %v1345 = vrot.slane %v1324, 7
          %vm1346 = vcmp.lt.s32.totalorder %v203, 1
          %v1347 = vsel %vm1346, %v1344, %v1345
          %v1348 = vsel %vm1346, %v1345, %v1344
          %v1349 = vsel %vm843, %v1342, %v1348
          %v1350 = vsel %vm844, %v1343, %v1347
          %v1351 = vrot.slane %v1337, 1
          %v1352 = vrot.slane %v1338, 1
          %v1353 = vsel %vm1341, %v1351, %v1352
          %v1354 = vsel %vm1341, %v1352, %v1351
          %v1355 = vrot.slane %v1337, 7
          %v1356 = vrot.slane %v1338, 7
          %v1357 = vsel %vm1346, %v1355, %v1356
          %v1358 = vsel %vm1346, %v1356, %v1355
          %v1359 = vsel %vm843, %v1353, %v1358
          %v1360 = vsel %vm844, %v1354, %v1357
          %v1361 = vmul.f32 %v249, %v858
          %v1362 = vmul.f32 %v250, %v858
          %v1363 = vlaneseq
          %v1364 = vshrl.u32 %v1363, 7
          %v1365 = vsub.s32 1, %v1364
          %v1366 = vrot.slane %v739, %v1365
          %v1367 = vmul.f32 %v249, %v1366
          %v1368 = vmul.f32 %v250, %v1366
          %v1369 = vmul.f32 %v848, %v1323
          %v1370 = vmul.f32 %v848, %v1324
          %v1371 = vmul.f32 %v1361, %v1337
          %v1372 = vmul.f32 %v1362, %v1338
          %v1373 = vsub.f32 %v1369, %v1371
          %v1374 = vsub.f32 %v1370, %v1372
          %v1375 = vmul.f32 %v1367, %v1349
          %v1376 = vmul.f32 %v1368, %v1350
          %v1377 = vadd.f32 %v1373, %v1375
          %v1378 = vadd.f32 %v1374, %v1376
          %v1379 = vmul.f32 %v862, %v1359
          %v1380 = vmul.f32 %v862, %v1360
          %v1381 = vsub.f32 %v1377, %v1379
          %v1382 = vsub.f32 %v1378, %v1380
          %v1383 = vmul.f32 %v848, %v1337
          %v1384 = vmul.f32 %v848, %v1338
          %v1385 = vmul.f32 %v1361, %v1323
          %v1386 = vmul.f32 %v1362, %v1324
          %v1387 = vadd.f32 %v1383, %v1385
          %v1388 = vadd.f32 %v1384, %v1386
          %v1389 = vmul.f32 %v1367, %v1359
          %v1390 = vmul.f32 %v1368, %v1360
          %v1391 = vadd.f32 %v1387, %v1389
          %v1392 = vadd.f32 %v1388, %v1390
          %v1393 = vmul.f32 %v862, %v1349
          %v1394 = vmul.f32 %v862, %v1350
          %v1395 = vadd.f32 %v1391, %v1393
          %v1396 = vadd.f32 %v1392, %v1394
          %v1397 = vld [vmem:[%s1 + $0x10] sm:$0xff]
          %v1398 = vld [vmem:[%s1 + $0x18] sm:$0xff]
          %v1399 = vld [vmem:[%s2 + $0x10] sm:$0xff]
          %v1400 = vld [vmem:[%s2 + $0x18] sm:$0xff]
          %v1402 = vsel %vm881, %v1397, 0
          %v1405 = vsel %vm881, %v1398, 0
          %1407 = vmatprep.subr.mxu0 0.0
          %1408 = vmatpush1.msra.mxu0 0.0
          %1409 = vmatprep.subr.mxu0 0.0
          %1410 = vmatpush1.msra.mxu0 0.0
          %1411 = vmatprep.subr.mxu0 0.0
          %1412 = vmatpush1.msra.mxu0 0.0
          %1413 = vmatprep.subr.mxu0 0.0
          %1414 = vmatpush1.msra.mxu0 0.0
          %1415 = vmatprep.subr.mxu0 0.0
          %1416 = vmatpush1.msra.mxu0 0.0
          %1417 = vmatprep.subr.mxu0 0.0
          %1418 = vmatpush1.msra.mxu0 0.0
          %1419 = vmatprep.subr.mxu0 0.0
          %1420 = vmatpush1.msra.mxu0 0.0
          %1421 = vmatprep.subr.mxu0 0.0
          %1422 = vmatpush1.msra.mxu0 0.0
          %1423 = vmatprep.subr.mxu0 0.0
          %1424 = vmatpush1.msra.mxu0 0.0
          %1425 = vmatprep.subr.mxu0 0.0
          %1426 = vmatpush1.msra.mxu0 0.0
          %1427 = vmatprep.subr.mxu0 0.0
          %1428 = vmatpush1.msra.mxu0 0.0
          %1429 = vmatprep.subr.mxu0 0.0
          %1430 = vmatpush1.msra.mxu0 0.0
          %1431 = vmatprep.subr.mxu0 0.0
          %1432 = vmatpush1.msra.mxu0 0.0
          %1433 = vmatprep.subr.mxu0 0.0
          %1434 = vmatpush1.msra.mxu0 0.0
          %1435 = vmatprep.subr.mxu0 0.0
          %1436 = vmatpush1.msra.mxu0 %v1382
          %1437 = vmatprep.subr.mxu0 0.0
          %1438 = vmatpush1.msra.mxu0 %v1381
          %1439 = vmatprep.subr.mxu0 0.0
          %1440 = vmatpush2.msra.mxu0 0.0
          %1441 = vmatprep.subr.mxu0 0.0
          %1442 = vmatpush2.msra.mxu0 0.0
          %1443 = vmatprep.subr.mxu0 0.0
          %1444 = vmatpush2.msra.mxu0 0.0
          %1445 = vmatprep.subr.mxu0 0.0
          %1446 = vmatpush2.msra.mxu0 0.0
          %1447 = vmatprep.subr.mxu0 0.0
          %1448 = vmatpush2.msra.mxu0 0.0
          %1449 = vmatprep.subr.mxu0 0.0
          %1450 = vmatpush2.msra.mxu0 0.0
          %1451 = vmatprep.subr.mxu0 0.0
          %1452 = vmatpush2.msra.mxu0 0.0
          %1453 = vmatprep.subr.mxu0 0.0
          %1454 = vmatpush2.msra.mxu0 0.0
          %1455 = vmatprep.subr.mxu0 0.0
          %1456 = vmatpush2.msra.mxu0 0.0
          %1457 = vmatprep.subr.mxu0 0.0
          %1458 = vmatpush2.msra.mxu0 0.0
          %1459 = vmatprep.subr.mxu0 0.0
          %1460 = vmatpush2.msra.mxu0 0.0
          %1461 = vmatprep.subr.mxu0 0.0
          %1462 = vmatpush2.msra.mxu0 0.0
          %1463 = vmatprep.subr.mxu0 0.0
          %1464 = vmatpush2.msra.mxu0 0.0
          %1465 = vmatprep.subr.mxu0 0.0
          %1466 = vmatpush2.msra.mxu0 0.0
          %1467 = vmatprep.subr.mxu0 0.0
          %1468 = vmatpush2.msra.mxu0 0.0
          %1469 = vmatprep.subr.mxu0 0.0
          %1470 = vmatpush2.msra.mxu0 0.0
          %1471 = vmatprep.mubr.f32.mxu0 0.0
          %1472 = vmatmul.mubr.f32.gmra.mxu0 %v1402
          %v1473 = vpop.f32.mrf.mxu0
          %v1474 = vadd.f32 0.0, %v1473
          %v1475 = vpop.f32.mrf.mxu0
          %1476 = vmatprep.mubr.f32.mxu0 0.0
          %1477 = vmatmul.mubr.f32.gmra.mxu0 %v1405
          %v1478 = vpop.f32.mrf.mxu0
          %v1479 = vadd.f32 0.0, %v1478
          %v1480 = vpop.f32.mrf.mxu0
          %1481 = vdwg.mxu0
          %v1483 = vsel %vm881, %v1399, 0
          %v1486 = vsel %vm881, %v1400, 0
          %1488 = vmatprep.subr.mxu0 0.0
          %1489 = vmatpush1.msra.mxu0 0.0
          %1490 = vmatprep.subr.mxu0 0.0
          %1491 = vmatpush1.msra.mxu0 0.0
          %1492 = vmatprep.subr.mxu0 0.0
          %1493 = vmatpush1.msra.mxu0 0.0
          %1494 = vmatprep.subr.mxu0 0.0
          %1495 = vmatpush1.msra.mxu0 0.0
          %1496 = vmatprep.subr.mxu0 0.0
          %1497 = vmatpush1.msra.mxu0 0.0
          %1498 = vmatprep.subr.mxu0 0.0
          %1499 = vmatpush1.msra.mxu0 0.0
          %1500 = vmatprep.subr.mxu0 0.0
          %1501 = vmatpush1.msra.mxu0 0.0
          %1502 = vmatprep.subr.mxu0 0.0
          %1503 = vmatpush1.msra.mxu0 0.0
          %1504 = vmatprep.subr.mxu0 0.0
          %1505 = vmatpush1.msra.mxu0 0.0
          %1506 = vmatprep.subr.mxu0 0.0
          %1507 = vmatpush1.msra.mxu0 0.0
          %1508 = vmatprep.subr.mxu0 0.0
          %1509 = vmatpush1.msra.mxu0 0.0
          %1510 = vmatprep.subr.mxu0 0.0
          %1511 = vmatpush1.msra.mxu0 0.0
          %1512 = vmatprep.subr.mxu0 0.0
          %1513 = vmatpush1.msra.mxu0 0.0
          %1514 = vmatprep.subr.mxu0 0.0
          %1515 = vmatpush1.msra.mxu0 0.0
          %1516 = vmatprep.subr.mxu0 0.0
          %1517 = vmatpush1.msra.mxu0 %v1396
          %1518 = vmatprep.subr.mxu0 0.0
          %1519 = vmatpush1.msra.mxu0 %v1395
          %1520 = vmatprep.subr.mxu0 0.0
          %1521 = vmatpush2.msra.mxu0 0.0
          %1522 = vmatprep.subr.mxu0 0.0
          %1523 = vmatpush2.msra.mxu0 0.0
          %1524 = vmatprep.subr.mxu0 0.0
          %1525 = vmatpush2.msra.mxu0 0.0
          %1526 = vmatprep.subr.mxu0 0.0
          %1527 = vmatpush2.msra.mxu0 0.0
          %1528 = vmatprep.subr.mxu0 0.0
          %1529 = vmatpush2.msra.mxu0 0.0
          %1530 = vmatprep.subr.mxu0 0.0
          %1531 = vmatpush2.msra.mxu0 0.0
          %1532 = vmatprep.subr.mxu0 0.0
          %1533 = vmatpush2.msra.mxu0 0.0
          %1534 = vmatprep.subr.mxu0 0.0
          %1535 = vmatpush2.msra.mxu0 0.0
          %1536 = vmatprep.subr.mxu0 0.0
          %1537 = vmatpush2.msra.mxu0 0.0
          %1538 = vmatprep.subr.mxu0 0.0
          %1539 = vmatpush2.msra.mxu0 0.0
          %1540 = vmatprep.subr.mxu0 0.0
          %1541 = vmatpush2.msra.mxu0 0.0
          %1542 = vmatprep.subr.mxu0 0.0
          %1543 = vmatpush2.msra.mxu0 0.0
          %1544 = vmatprep.subr.mxu0 0.0
          %1545 = vmatpush2.msra.mxu0 0.0
          %1546 = vmatprep.subr.mxu0 0.0
          %1547 = vmatpush2.msra.mxu0 0.0
          %1548 = vmatprep.subr.mxu0 0.0
          %1549 = vmatpush2.msra.mxu0 0.0
          %1550 = vmatprep.subr.mxu0 0.0
          %1551 = vmatpush2.msra.mxu0 0.0
          %1552 = vmatprep.mubr.f32.mxu0 0.0
          %1553 = vmatmul.mubr.f32.gmra.mxu0 %v1483
          %v1554 = vpop.f32.mrf.mxu0
          %v1555 = vadd.f32 0.0, %v1554
          %v1556 = vpop.f32.mrf.mxu0
          %1557 = vmatprep.mubr.f32.mxu0 0.0
          %1558 = vmatmul.mubr.f32.gmra.mxu0 %v1486
          %v1559 = vpop.f32.mrf.mxu0
          %v1560 = vadd.f32 0.0, %v1559
          %v1561 = vpop.f32.mrf.mxu0
          %1562 = vdwg.mxu0
          %v1563 = vsub.f32 %v1474, %v1555
          %v1564 = vsub.f32 %v1479, %v1560
          %1565 = vmatprep.subr.mxu0 0.0
          %1566 = vmatpush1.msra.mxu0 0.0
          %1567 = vmatprep.subr.mxu0 0.0
          %1568 = vmatpush1.msra.mxu0 0.0
          %1569 = vmatprep.subr.mxu0 0.0
          %1570 = vmatpush1.msra.mxu0 0.0
          %1571 = vmatprep.subr.mxu0 0.0
          %1572 = vmatpush1.msra.mxu0 0.0
          %1573 = vmatprep.subr.mxu0 0.0
          %1574 = vmatpush1.msra.mxu0 0.0
          %1575 = vmatprep.subr.mxu0 0.0
          %1576 = vmatpush1.msra.mxu0 0.0
          %1577 = vmatprep.subr.mxu0 0.0
          %1578 = vmatpush1.msra.mxu0 0.0
          %1579 = vmatprep.subr.mxu0 0.0
          %1580 = vmatpush1.msra.mxu0 0.0
          %1581 = vmatprep.subr.mxu0 0.0
          %1582 = vmatpush1.msra.mxu0 0.0
          %1583 = vmatprep.subr.mxu0 0.0
          %1584 = vmatpush1.msra.mxu0 0.0
          %1585 = vmatprep.subr.mxu0 0.0
          %1586 = vmatpush1.msra.mxu0 0.0
          %1587 = vmatprep.subr.mxu0 0.0
          %1588 = vmatpush1.msra.mxu0 0.0
          %1589 = vmatprep.subr.mxu0 0.0
          %1590 = vmatpush1.msra.mxu0 0.0
          %1591 = vmatprep.subr.mxu0 0.0
          %1592 = vmatpush1.msra.mxu0 0.0
          %1593 = vmatprep.subr.mxu0 0.0
          %1594 = vmatpush1.msra.mxu0 %v1382
          %1595 = vmatprep.subr.mxu0 0.0
          %1596 = vmatpush1.msra.mxu0 %v1381
          %1597 = vmatprep.subr.mxu0 0.0
          %1598 = vmatpush2.msra.mxu0 0.0
          %1599 = vmatprep.subr.mxu0 0.0
          %1600 = vmatpush2.msra.mxu0 0.0
          %1601 = vmatprep.subr.mxu0 0.0
          %1602 = vmatpush2.msra.mxu0 0.0
          %1603 = vmatprep.subr.mxu0 0.0
          %1604 = vmatpush2.msra.mxu0 0.0
          %1605 = vmatprep.subr.mxu0 0.0
          %1606 = vmatpush2.msra.mxu0 0.0
          %1607 = vmatprep.subr.mxu0 0.0
          %1608 = vmatpush2.msra.mxu0 0.0
          %1609 = vmatprep.subr.mxu0 0.0
          %1610 = vmatpush2.msra.mxu0 0.0
          %1611 = vmatprep.subr.mxu0 0.0
          %1612 = vmatpush2.msra.mxu0 0.0
          %1613 = vmatprep.subr.mxu0 0.0
          %1614 = vmatpush2.msra.mxu0 0.0
          %1615 = vmatprep.subr.mxu0 0.0
          %1616 = vmatpush2.msra.mxu0 0.0
          %1617 = vmatprep.subr.mxu0 0.0
          %1618 = vmatpush2.msra.mxu0 0.0
          %1619 = vmatprep.subr.mxu0 0.0
          %1620 = vmatpush2.msra.mxu0 0.0
          %1621 = vmatprep.subr.mxu0 0.0
          %1622 = vmatpush2.msra.mxu0 0.0
          %1623 = vmatprep.subr.mxu0 0.0
          %1624 = vmatpush2.msra.mxu0 0.0
          %1625 = vmatprep.subr.mxu0 0.0
          %1626 = vmatpush2.msra.mxu0 0.0
          %1627 = vmatprep.subr.mxu0 0.0
          %1628 = vmatpush2.msra.mxu0 0.0
          %1629 = vmatprep.mubr.f32.mxu0 0.0
          %1630 = vmatmul.mubr.f32.gmra.mxu0 %v1483
          %v1631 = vpop.f32.mrf.mxu0
          %v1632 = vadd.f32 0.0, %v1631
          %v1633 = vpop.f32.mrf.mxu0
          %1634 = vmatprep.mubr.f32.mxu0 0.0
          %1635 = vmatmul.mubr.f32.gmra.mxu0 %v1486
          %v1636 = vpop.f32.mrf.mxu0
          %v1637 = vadd.f32 0.0, %v1636
          %v1638 = vpop.f32.mrf.mxu0
          %1639 = vdwg.mxu0
          %1640 = vmatprep.subr.mxu0 0.0
          %1641 = vmatpush1.msra.mxu0 0.0
          %1642 = vmatprep.subr.mxu0 0.0
          %1643 = vmatpush1.msra.mxu0 0.0
          %1644 = vmatprep.subr.mxu0 0.0
          %1645 = vmatpush1.msra.mxu0 0.0
          %1646 = vmatprep.subr.mxu0 0.0
          %1647 = vmatpush1.msra.mxu0 0.0
          %1648 = vmatprep.subr.mxu0 0.0
          %1649 = vmatpush1.msra.mxu0 0.0
          %1650 = vmatprep.subr.mxu0 0.0
          %1651 = vmatpush1.msra.mxu0 0.0
          %1652 = vmatprep.subr.mxu0 0.0
          %1653 = vmatpush1.msra.mxu0 0.0
          %1654 = vmatprep.subr.mxu0 0.0
          %1655 = vmatpush1.msra.mxu0 0.0
          %1656 = vmatprep.subr.mxu0 0.0
          %1657 = vmatpush1.msra.mxu0 0.0
          %1658 = vmatprep.subr.mxu0 0.0
          %1659 = vmatpush1.msra.mxu0 0.0
          %1660 = vmatprep.subr.mxu0 0.0
          %1661 = vmatpush1.msra.mxu0 0.0
          %1662 = vmatprep.subr.mxu0 0.0
          %1663 = vmatpush1.msra.mxu0 0.0
          %1664 = vmatprep.subr.mxu0 0.0
          %1665 = vmatpush1.msra.mxu0 0.0
          %1666 = vmatprep.subr.mxu0 0.0
          %1667 = vmatpush1.msra.mxu0 0.0
          %1668 = vmatprep.subr.mxu0 0.0
          %1669 = vmatpush1.msra.mxu0 %v1396
          %1670 = vmatprep.subr.mxu0 0.0
          %1671 = vmatpush1.msra.mxu0 %v1395
          %1672 = vmatprep.subr.mxu0 0.0
          %1673 = vmatpush2.msra.mxu0 0.0
          %1674 = vmatprep.subr.mxu0 0.0
          %1675 = vmatpush2.msra.mxu0 0.0
          %1676 = vmatprep.subr.mxu0 0.0
          %1677 = vmatpush2.msra.mxu0 0.0
          %1678 = vmatprep.subr.mxu0 0.0
          %1679 = vmatpush2.msra.mxu0 0.0
          %1680 = vmatprep.subr.mxu0 0.0
          %1681 = vmatpush2.msra.mxu0 0.0
          %1682 = vmatprep.subr.mxu0 0.0
          %1683 = vmatpush2.msra.mxu0 0.0
          %1684 = vmatprep.subr.mxu0 0.0
          %1685 = vmatpush2.msra.mxu0 0.0
          %1686 = vmatprep.subr.mxu0 0.0
          %1687 = vmatpush2.msra.mxu0 0.0
          %1688 = vmatprep.subr.mxu0 0.0
          %1689 = vmatpush2.msra.mxu0 0.0
          %1690 = vmatprep.subr.mxu0 0.0
          %1691 = vmatpush2.msra.mxu0 0.0
          %1692 = vmatprep.subr.mxu0 0.0
          %1693 = vmatpush2.msra.mxu0 0.0
          %1694 = vmatprep.subr.mxu0 0.0
          %1695 = vmatpush2.msra.mxu0 0.0
          %1696 = vmatprep.subr.mxu0 0.0
          %1697 = vmatpush2.msra.mxu0 0.0
          %1698 = vmatprep.subr.mxu0 0.0
          %1699 = vmatpush2.msra.mxu0 0.0
          %1700 = vmatprep.subr.mxu0 0.0
          %1701 = vmatpush2.msra.mxu0 0.0
          %1702 = vmatprep.subr.mxu0 0.0
          %1703 = vmatpush2.msra.mxu0 0.0
          %1704 = vmatprep.mubr.f32.mxu0 0.0
          %1705 = vmatmul.mubr.f32.gmra.mxu0 %v1402
          %v1706 = vpop.f32.mrf.mxu0
          %v1707 = vadd.f32 %v1632, %v1706
          %v1708 = vpop.f32.mrf.mxu0
          %1709 = vmatprep.mubr.f32.mxu0 0.0
          %1710 = vmatmul.mubr.f32.gmra.mxu0 %v1405
          %v1711 = vpop.f32.mrf.mxu0
          %v1712 = vadd.f32 %v1637, %v1711
          %v1713 = vpop.f32.mrf.mxu0
          %1714 = vdwg.mxu0
          %v1715 = vmul.f32 %v1563, %v1563
          %v1716 = vmul.f32 %v1564, %v1564
          %v1717 = vmul.f32 %v1707, %v1707
          %v1718 = vmul.f32 %v1712, %v1712
          %v1719 = vadd.f32 %v1715, %v1717
          %v1720 = vadd.f32 %v1716, %v1718
          %v1721 = vld [vmem:[%s3] sm:$0xf]
          %v1723 = vsel %vm881, %v1721, 0
          %1725 = vmatprep.subr.mxu0 0.0
          %1726 = vmatpush1.msra.mxu0 0.0
          %1727 = vmatprep.subr.mxu0 0.0
          %1728 = vmatpush1.msra.mxu0 0.0
          %1729 = vmatprep.subr.mxu0 0.0
          %1730 = vmatpush1.msra.mxu0 0.0
          %1731 = vmatprep.subr.mxu0 0.0
          %1732 = vmatpush1.msra.mxu0 0.0
          %1733 = vmatprep.subr.mxu0 0.0
          %1734 = vmatpush1.msra.mxu0 0.0
          %1735 = vmatprep.subr.mxu0 0.0
          %1736 = vmatpush1.msra.mxu0 0.0
          %1737 = vmatprep.subr.mxu0 0.0
          %1738 = vmatpush1.msra.mxu0 0.0
          %1739 = vmatprep.subr.mxu0 0.0
          %1740 = vmatpush1.msra.mxu0 0.0
          %1741 = vmatprep.subr.mxu0 0.0
          %1742 = vmatpush1.msra.mxu0 0.0
          %1743 = vmatprep.subr.mxu0 0.0
          %1744 = vmatpush1.msra.mxu0 0.0
          %1745 = vmatprep.subr.mxu0 0.0
          %1746 = vmatpush1.msra.mxu0 0.0
          %1747 = vmatprep.subr.mxu0 0.0
          %1748 = vmatpush1.msra.mxu0 0.0
          %1749 = vmatprep.subr.mxu0 0.0
          %1750 = vmatpush1.msra.mxu0 0.0
          %1751 = vmatprep.subr.mxu0 0.0
          %1752 = vmatpush1.msra.mxu0 0.0
          %1753 = vmatprep.subr.mxu0 0.0
          %1754 = vmatpush1.msra.mxu0 %v1720
          %1755 = vmatprep.subr.mxu0 0.0
          %1756 = vmatpush1.msra.mxu0 %v1719
          %1757 = vmatprep.subr.mxu0 0.0
          %1758 = vmatpush2.msra.mxu0 0.0
          %1759 = vmatprep.subr.mxu0 0.0
          %1760 = vmatpush2.msra.mxu0 0.0
          %1761 = vmatprep.subr.mxu0 0.0
          %1762 = vmatpush2.msra.mxu0 0.0
          %1763 = vmatprep.subr.mxu0 0.0
          %1764 = vmatpush2.msra.mxu0 0.0
          %1765 = vmatprep.subr.mxu0 0.0
          %1766 = vmatpush2.msra.mxu0 0.0
          %1767 = vmatprep.subr.mxu0 0.0
          %1768 = vmatpush2.msra.mxu0 0.0
          %1769 = vmatprep.subr.mxu0 0.0
          %1770 = vmatpush2.msra.mxu0 0.0
          %1771 = vmatprep.subr.mxu0 0.0
          %1772 = vmatpush2.msra.mxu0 0.0
          %1773 = vmatprep.subr.mxu0 0.0
          %1774 = vmatpush2.msra.mxu0 0.0
          %1775 = vmatprep.subr.mxu0 0.0
          %1776 = vmatpush2.msra.mxu0 0.0
          %1777 = vmatprep.subr.mxu0 0.0
          %1778 = vmatpush2.msra.mxu0 0.0
          %1779 = vmatprep.subr.mxu0 0.0
          %1780 = vmatpush2.msra.mxu0 0.0
          %1781 = vmatprep.subr.mxu0 0.0
          %1782 = vmatpush2.msra.mxu0 0.0
          %1783 = vmatprep.subr.mxu0 0.0
          %1784 = vmatpush2.msra.mxu0 0.0
          %1785 = vmatprep.subr.mxu0 0.0
          %1786 = vmatpush2.msra.mxu0 0.0
          %1787 = vmatprep.subr.mxu0 0.0
          %1788 = vmatpush2.msra.mxu0 0.0
          %1789 = vmatprep.mubr.f32.mxu0 0.0
          %1790 = vmatmul.mubr.f32.gmra.mxu0 %v1723
          %v1791 = vpop.f32.mrf.mxu0
          %v1792 = vadd.f32 0.0, %v1791
          %v1793 = vpop.f32.mrf.mxu0
          %1794 = vdwg.mxu0
          %s1795 = smul.u32 %s252, 4
          %s1796 = scalar_lea.vmem %s193, %s1795 [#allocation2]
          %1797 = vst [vmem:[%s1796] sm:$0xf] %v1792
        $region41: #{tpu_custom_call.1} parent=35 // loop_footer
          %s256 = sadd.s32 1, %s252
        $region42: #{tpu_custom_call.1} parent=35 // loop_footer_branch
          %251 = sbr.rel target = $region38
        $region43: #{tpu_custom_call.1} parent=35 // loop_exit
          _
        %s1798 = sand.u32 %s115, 1
        %s1799 = scalar_lea.sflag [#allocation3], %s1798
        %s1800 = sand.u32 %s115, 1
        %s1801 = smul.addr %s1800, 8
        %s1802 = scalar_lea.vmem [#allocation2], %s1801
        // Predicated region
        $region44: #{tpu_custom_call.1} parent=35 // pred_check
          %p1803 = pneg %p125
        $region45: #{tpu_custom_call.1} parent=35 // pred_check_branch
          %1805 = sbr.rel (%p1803) target = $region47
        $region46: #{tpu_custom_call.1} parent=35 // pred_region
          %s1806 = smul.u32 2, %s18
          %s1808 = ssub.s32 128, 128
          %1809 = vsyncadd %s1799, %s1808
          %s1810 = smul.addr %s1806, 64
          %s1811 = scalar_lea.hbm %s4, %s1810
          %s1812 = sshll.u32 %s1802, 4
          %s1813 = int_to_ptr.vmem [resolvable:$true] %s1812
          %1818 = dma.vmem_to_hbm [thread:$0]  %s1813, 128, %s1811, %s1799, 64, 64, 4
        $region47: #{tpu_custom_call.1} parent=35 // pred_fallthru
          _
      $region36: #{tpu_custom_call.1} parent=5 // pred_fallthru
        _
      %p1819 = scmp.le.s32.totalorder 2, %s13
      // Predicated region
      $region48: #{tpu_custom_call.1} parent=5 // pred_check
        %p1820 = pneg %p1819
      $region49: #{tpu_custom_call.1} parent=5 // pred_check_branch
        %1822 = sbr.rel (%p1820) target = $region51
      $region50: #{tpu_custom_call.1} parent=5 // pred_region
        %s1823 = ssub.s32 %s13, 2
        // Predicated region
        $region52: #{tpu_custom_call.1} parent=50 // pred_check
          %p1824 = pneg %p131
        $region53: #{tpu_custom_call.1} parent=50 // pred_check_branch
          %1826 = sbr.rel (%p1824) target = $region55
        $region54: #{tpu_custom_call.1} parent=50 // pred_region
          %s1827 = sand.u32 %s116, 1
          %s1828 = scalar_lea.sflag [#allocation3], %s1827
          %s1829 = sand.u32 %s116, 1
          %s1830 = smul.addr %s1829, 8
          %s1831 = scalar_lea.vmem [#allocation2], %s1830
          %1832 = dma.done %s1828, 128
        $region55: #{tpu_custom_call.1} parent=50 // pred_fallthru
          _
      $region51: #{tpu_custom_call.1} parent=5 // pred_fallthru
        _
    $region6: #{tpu_custom_call.1} parent=1 // loop_footer
      %s17 = sadd.s32 1, %s13
    $region7: #{tpu_custom_call.1} parent=1 // loop_footer_branch
      %12 = sbr.rel target = $region3
    $region8: #{tpu_custom_call.1} parent=1 // loop_exit
      _
    %1833 = vsyncpa [#allocation3], 1
    %s1834 = scalar_lea.sflag [#allocation3], 1
    %1835 = vsyncpa %s1834, 1

</llo_original>
